<compile_context>
chip_gen: v5e
topology: v5e:2x2
jax: 0.10.0
libtpu: 0.0.40
codegen_flags: <defaults>
</compile_context>

<pallas_src>
import dataclasses
import functools
from typing import Optional

import numpy as np
import jax
import jax.numpy as jnp
from jax.experimental import pallas as pl
from jax.experimental.pallas import tpu as pltpu


# ----------------------------- config ---------------------------------------

@dataclasses.dataclass(frozen=True)
class VQVAELayerConfig:
    input_dim: int
    middle_dim: int
    output_dim: int
    pooling: Optional[int] = None
    upsampling: Optional[int] = None


def _cdiv(a, b):
    return -(-a // b)


# ----------------------------- fused kernel ----------------------------------

def _vqvae_fused_kernel(
    xm_ref, xt_ref, xb_ref,                 # main input band + neighbour bands
    a1_ref, b1_ref, a2_ref, b2_ref, a3_ref, b3_ref,
    o_ref,
    *, R, up, pool, compute_dtype,
):
    f32 = jnp.float32
    b = pl.program_id(1)
    nb = pl.num_programs(1)
    Ru = R * up
    Ro = Ru // pool

    def mm(a, w_ref):                       # MXU matmul, f32 accumulation
        return jnp.dot(a.astype(compute_dtype), w_ref[...],
                       preferred_element_type=f32)

    # Input band in fused (row, W*Cin) layout plus one halo row borrowed from
    # each neighbouring band (last row of the band above / first row below).
    xm = xm_ref[0].astype(f32)                        # (R,   W*Cin)
    xt = xt_ref[0][R - 1:R, :].astype(f32)            # (1,   W*Cin)
    xb = xb_ref[0][0:1, :].astype(f32)                # (1,   W*Cin)
    x_all = jnp.concatenate([xt, xm, xb], axis=0)     # (R+2, W*Cin)

    # conv1 (1x1) fused with the nearest column-upsample: one matmul.
    h1 = jnp.maximum(mm(jnp.maximum(x_all, 0.0), a1_ref) + b1_ref[...], 0.0)
    # h1: (R+2, Wu*Cm); rows = [top halo, band rows..., bottom halo].

    keep_t = (b > 0).astype(f32)        # out-of-image halo == conv2's zero-pad row
    keep_b = (b < nb - 1).astype(f32)
    top = h1[0:1] * keep_t
    bot = h1[R + 1:R + 2] * keep_b
    mid = h1[1:R + 1]
    if up > 1:                          # nearest row-upsample of the band rows
        mid = jnp.broadcast_to(mid[:, None, :], (R, up, mid.shape[-1]))
        mid = mid.reshape(R * up, -1)
    band = jnp.concatenate([top, mid, bot], axis=0)   # (Ru+2, Wu*Cm)

    # conv2 (3x3, SAME) as ONE stacked-K banded matmul (K = 3*Wu*Cm): taps
    # accumulate inside the MXU -- no per-tap slice copies, no serial VPU adds.
    imrow = jnp.concatenate(
        [band[0:Ru], band[1:Ru + 1], band[2:Ru + 2]], axis=1)       # (Ru, 3*Wu*Cm)
    h2 = jnp.maximum(mm(imrow, a2_ref) + b2_ref[...], 0.0)          # (Ru, Wu*Cm)

    # avg-pool along rows (column pooling is folded into the epilogue matrix).
    if pool > 1:
        h2 = h2.reshape(Ro, pool, h2.shape[-1])
        h2 = sum(h2[:, i] for i in range(pool)) * (1.0 / pool)
        xs = xm.reshape(R // pool, pool, xm.shape[-1])
        xs = sum(xs[:, i] for i in range(pool)) * (1.0 / pool)
    else:
        xs = xm
    if up > 1:                          # shortcut nearest row-upsample
        xs = jnp.broadcast_to(xs[:, None, :], (xs.shape[0], up, xs.shape[-1]))
        xs = xs.reshape(Ro, -1)

    # Epilogue: conv3 (1x1) + column avg-pool + shortcut (column pool/upsample
    # + channel projection) fused into ONE matmul whose result is already in
    # the lane-dense (Ro, Wo*Cout) output layout.
    epi = jnp.concatenate([h2, xs], axis=1)            # (Ro, Wu*Cm + W*Cin)
    o_ref[0] = (mm(epi, a3_ref) + b3_ref[...]).astype(o_ref.dtype)


# ----------------------------- operator matrices ------------------------------

def _shortcut_projection(Cin, Cout):
    """Channel adjustment of the shortcut as a constant (Cin, Cout) projection.

    Mirrors the PyTorch module: zero-pad trailing channels when Cin < Cout;
    `shortcut[:, :-(Cout - Cin)]` when Cin > Cout (only type-checks when
    Cin - Cout == Cout)."""
    if Cin > Cout and (Cin - Cout) != Cout:
        raise ValueError(
            "input_dim > output_dim with input_dim - output_dim != output_dim "
            "is a shape error in the original PyTorch VQVAELayer as well.")
    keep = Cin if Cin <= Cout else Cin - Cout
    s = np.zeros((Cin, Cout), np.float32)
    for i in range(min(keep, Cout)):
        s[i, i] = 1.0
    return s


def _build_operators(params, cfg, W, up, pool):
    """Block matrices that turn the whole layer into 3 matmuls per band."""
    Cin, Cm, Cout = cfg.input_dim, cfg.middle_dim, cfg.output_dim
    Wu, Wo = W * up, (W * up) // pool
    f32 = jnp.float32
    w1 = params["w1"].astype(f32)           # (Cin, Cm)
    w2 = params["w2"].astype(f32)           # (3, 3, Cm, Cm)   [ky, kx, in, out]
    w3 = params["w3"].astype(f32)           # (Cm, Cout)

    # conv1 + nearest column-upsample: (W*Cin, Wu*Cm)
    sel1 = (np.arange(Wu)[None, :] // up ==
            np.arange(W)[:, None]).astype(np.float32)            # (W, Wu)
    A1 = jnp.einsum("wv,io->wivo", jnp.asarray(sel1), w1).reshape(W * Cin, Wu * Cm)

    # conv2 (3x3, SAME) banded block matrices, stacked over ky -> (3*Wu*Cm, Wu*Cm)
    wi = np.arange(Wu)[:, None]
    wo = np.arange(Wu)[None, :]
    sel2 = np.stack([(wi - wo + 1 == dx) for dx in range(3)], 0).astype(np.float32)
    A2 = jnp.einsum("xab,yxio->yaibo", jnp.asarray(sel2), w2
                    ).reshape(3 * Wu * Cm, Wu * Cm)

    # epilogue: [column-avg-pool + conv3 ; shortcut column pool/upsample/proj]
    sel3 = ((np.arange(Wu)[:, None] // pool == np.arange(Wo)[None, :])
            .astype(np.float32) / pool)                          # (Wu, Wo)
    A3m = jnp.einsum("ab,io->aibo", jnp.asarray(sel3), w3).reshape(Wu * Cm, Wo * Cout)
    S = _shortcut_projection(Cin, Cout)                          # (Cin, Cout)
    selS = ((np.arange(W)[:, None] // pool == np.arange(Wo)[None, :] // up)
            .astype(np.float32) / pool)                          # (W, Wo)
    A3s = jnp.asarray(np.einsum("ab,io->aibo", selS, S).reshape(W * Cin, Wo * Cout))
    A3 = jnp.concatenate([A3m, A3s], axis=0)                     # (Wu*Cm+W*Cin, Wo*Cout)

    b1t = jnp.tile(params["b1"].reshape(1, Cm).astype(f32), (1, Wu))
    b2t = jnp.tile(params["b2"].reshape(1, Cm).astype(f32), (1, Wu))
    b3t = jnp.tile(params["b3"].reshape(1, Cout).astype(f32), (1, Wo))
    return A1, A2, A3, b1t, b2t, b3t


# ----------------------------- band / VMEM selection --------------------------

def _vmem_capacity_bytes():
    try:
        cap = getattr(pltpu.get_tpu_info(), "vmem_capacity_bytes", None)
        if cap:
            return int(cap)
    except Exception:
        pass
    return 64 * 1024 * 1024   # conservative fallback (v7x per-core VMEM)


def _choose_band_rows(N, H, W, Cin, Cm, Cout, up, pool, budget_bytes,
                      min_grid_steps=4):
    """Largest row band whose live VMEM fits the chip-aware budget, keeping the
    band dims (8,128)-friendly and preferring >= min_grid_steps total grid
    steps (>=2 per TensorCore on 2-core chips)."""
    Ho = (H * up) // pool

    def dim_ok(r, full):
        return r == full or r % 8 == 0

    cands = [r for r in range(1, H + 1)
             if H % r == 0 and r % pool == 0
             and dim_ok(r, H) and dim_ok((r * up) // pool, Ho)]
    if not cands:
        cands = [H]

    wc, wu = W * Cin, W * up
    wcm, wco = wu * Cm, (wu // pool) * Cout

    def arr(rows, cols):                  # f32 bytes, padded to the vreg grid
        return 4 * (_cdiv(rows, 8) * 8) * (_cdiv(cols, 128) * 128)

    weights = (arr(wc, wcm) + arr(3 * wcm, wcm) + arr(wcm + wc, wco)
               + 2 * arr(1, wcm) + arr(1, wco))

    def est(r):
        ru = r * up
        ro = ru // pool
        io = 2 * (3 * arr(r, wc) + arr(ro, wco))          # double-buffered blocks
        live = (2 * arr(r + 2, wc) + arr(r + 2, wcm) + arr(ru + 2, wcm)
                + arr(ru, 3 * wcm) + 2 * arr(ru, wcm)
                + arr(ro, wcm) + arr(ro, wc) + arr(ro, wcm + wc) + arr(ro, wco))
        return io + weights + 2 * live                    # 2x headroom for temps

    fits = [r for r in cands if est(r) <= budget_bytes] or [min(cands)]
    pref = [r for r in fits if N * (H // r) >= min_grid_steps]
    return max(pref) if pref else max(fits)


# ----------------------------- wrapper ---------------------------------------

def vqvae_layer_forward_nhwc(params, x_nhwc, cfg: VQVAELayerConfig, *,
                             compute_dtype=jnp.float32, out_dtype=jnp.float32,
                             band_rows=None):
    """Fused VQVAELayer forward.  Input / output are NHWC (kernel-native)."""
    x = x_nhwc.astype(jnp.float32)
    N, H, W, Cin = x.shape
    Cm, Cout = cfg.middle_dim, cfg.output_dim
    up = cfg.upsampling or 1
    pool = cfg.pooling or 1
    if Cin != cfg.input_dim:
        raise ValueError("input channel mismatch")
    if pool > 1 and (H % pool or W % pool):
        # TODO(synk): AvgPool2d floor semantics for non-divisible spatial dims.
        raise NotImplementedError("pooling requires H, W divisible by pooling")

    vmem_cap = _vmem_capacity_bytes()
    R = band_rows or _choose_band_rows(N, H, W, Cin, Cm, Cout, up, pool,
                                       budget_bytes=vmem_cap // 4)
    assert H % R == 0 and R % pool == 0
    nb = H // R
    Ru, Wu = R * up, W * up
    Ro, Wo = Ru // pool, Wu // pool
    Ho = (H * up) // pool

    A1, A2, A3, b1t, b2t, b3t = _build_operators(params, cfg, W, up, pool)
    A1 = A1.astype(compute_dtype)
    A2 = A2.astype(compute_dtype)
    A3 = A3.astype(compute_dtype)

    # lane-dense fused (W, C) trailing dim -- free row-major reshapes
    x3 = x.reshape(N, H, W * Cin)

    kernel = functools.partial(_vqvae_fused_kernel, R=R, up=up, pool=pool,
                               compute_dtype=compute_dtype)

    def full_spec(a):
        return pl.BlockSpec(a.shape, lambda n, b: (0, 0))

    out = pl.pallas_call(
        kernel,
        out_shape=jax.ShapeDtypeStruct((N, Ho, Wo * Cout), out_dtype),
        grid=(N, nb),
        in_specs=[
            # main row band
            pl.BlockSpec((1, R, W * Cin), lambda n, b: (n, b, 0)),
            # neighbour bands (clamped at the image borders; only one row of
            # each is used; the out-of-image ones are zeroed in-kernel -- they
            # are exactly conv2's zero-pad rows)
            pl.BlockSpec((1, R, W * Cin),
                         lambda n, b: (n, jnp.maximum(b - 1, 0), 0)),
            pl.BlockSpec((1, R, W * Cin),
                         lambda n, b: (n, jnp.minimum(b + 1, nb - 1), 0)),
            # operator matrices / biases: constant index -> stay VMEM-resident
            full_spec(A1), full_spec(b1t),
            full_spec(A2), full_spec(b2t),
            full_spec(A3), full_spec(b3t),
        ],
        out_specs=pl.BlockSpec((1, Ro, Wo * Cout), lambda n, b: (n, b, 0)),
        compiler_params=pltpu.CompilerParams(
            dimension_semantics=("parallel", "parallel"),
            vmem_limit_bytes=min(max(int(vmem_cap * 0.55), 32 * 1024 * 1024),
                                 100 * 1024 * 1024),
        ),
    )(x3, x3, x3, A1, b1t, A2, b2t, A3, b3t)
    return out.reshape(N, Ho, Wo, Cout)


def vqvae_layer_forward(params, x_nchw, cfg: VQVAELayerConfig, **kwargs):
    """PyTorch-layout (NCHW) wrapper.  Prefer the NHWC entry point if the
    caller can produce/consume channels-last and skip the boundary relayouts."""
    out = vqvae_layer_forward_nhwc(
        params, jnp.transpose(x_nchw, (0, 2, 3, 1)), cfg, **kwargs)
    return jnp.transpose(out, (0, 3, 1, 2))


# ----------------------------- params ----------------------------------------

def init_params(cfg: VQVAELayerConfig, seed: int = 42):
    # Deterministic init mirroring torch Conv2d default (uniform +/- 1/sqrt(fan_in)).
    k = jax.random.split(jax.random.PRNGKey(seed), 6)
    s1 = 1.0 / np.sqrt(cfg.input_dim)
    s2 = 1.0 / np.sqrt(cfg.middle_dim * 9)
    s3 = 1.0 / np.sqrt(cfg.middle_dim)
    return {
        "w1": jax.random.uniform(k[0], (cfg.input_dim, cfg.middle_dim), jnp.float32, -s1, s1),
        "b1": jax.random.uniform(k[1], (cfg.middle_dim,), jnp.float32, -s1, s1),
        "w2": jax.random.uniform(k[2], (3, 3, cfg.middle_dim, cfg.middle_dim), jnp.float32, -s2, s2),
        "b2": jax.random.uniform(k[3], (cfg.middle_dim,), jnp.float32, -s2, s2),
        "w3": jax.random.uniform(k[4], (cfg.middle_dim, cfg.output_dim), jnp.float32, -s3, s3),
        "b3": jax.random.uniform(k[5], (cfg.output_dim,), jnp.float32, -s3, s3),
    }


# ----------------------------- pure-JAX reference ----------------------------

def _avg_pool_nhwc(x, p):
    if p is None or p == 1:
        return x
    N, H, W, C = x.shape
    return x[:, :H // p * p, :W // p * p, :].reshape(
        N, H // p, p, W // p, p, C).mean(axis=(2, 4))


def _upsample_nearest_nhwc(x, s):
    if s is None or s == 1:
        return x
    return jnp.repeat(jnp.repeat(x, s, axis=1), s, axis=2)


def reference_forward(params, x_nchw, cfg: VQVAELayerConfig):
    x = jnp.transpose(x_nchw, (0, 2, 3, 1)).astype(jnp.float32)
    dn = ("NHWC", "HWIO", "NHWC")

    def conv1x1(v, w, b):
        return jax.lax.conv_general_dilated(
            v, w.reshape(1, 1, *w.shape), (1, 1), "VALID",
            dimension_numbers=dn) + b

    def conv3x3(v, w, b):
        return jax.lax.conv_general_dilated(
            v, w, (1, 1), "SAME", dimension_numbers=dn) + b

    shortcut = _upsample_nearest_nhwc(_avg_pool_nhwc(x, cfg.pooling), cfg.upsampling)
    h = conv1x1(jax.nn.relu(x), params["w1"], params["b1"])
    h = conv3x3(_upsample_nearest_nhwc(jax.nn.relu(h), cfg.upsampling),
                params["w2"], params["b2"])
    h = conv1x1(_avg_pool_nhwc(jax.nn.relu(h), cfg.pooling),
                params["w3"], params["b3"])
    pad = h.shape[-1] - shortcut.shape[-1]
    if pad < 0:
        shortcut = shortcut[..., :-pad]
    elif pad > 0:
        shortcut = jnp.pad(shortcut, ((0, 0), (0, 0), (0, 0), (0, pad)))
    return jnp.transpose(h + shortcut, (0, 3, 1, 2))


# ----------------------------- main -------------------------------------------

if __name__ == "__main__":
    x = jax.random.normal(jax.random.PRNGKey(0), (2, 4, 16, 16), jnp.float32)  # NCHW
    # Tolerances leave margin for TPU default matmul precision; structural bugs
    # would produce errors orders of magnitude larger.
    RTOL, ATOL = 2e-3, 5e-3

    # config 1: decoder-style block (2x nearest upsample); exercises halos.
    cfg = VQVAELayerConfig(input_dim=4, middle_dim=8, output_dim=8,
                           pooling=None, upsampling=2)
    params = init_params(cfg)
    fwd = jax.jit(lambda p, v: vqvae_layer_forward(p, v, cfg))
    out = jax.block_until_ready(fwd(params, x))
    assert out.shape == (2, 8, 32, 32), out.shape
    ref = jax.block_until_ready(reference_forward(params, x, cfg))
    np.testing.assert_allclose(np.asarray(out), np.asarray(ref), rtol=RTOL, atol=ATOL)

    # bf16 MXU path (optional on v6e / v7x); f32 accumulation, looser check.
    fwd_bf16 = jax.jit(lambda p, v: vqvae_layer_forward(
        p, v, cfg, compute_dtype=jnp.bfloat16))
    out_bf16 = jax.block_until_ready(fwd_bf16(params, x))
    np.testing.assert_allclose(np.asarray(out_bf16), np.asarray(ref),
                               rtol=5e-2, atol=1e-1)

    # config 2: no resampling, output channels > input channels; exercises the
    # shortcut channel projection and the up == 1 path.
    cfg2 = VQVAELayerConfig(input_dim=4, middle_dim=8, output_dim=16,
                            pooling=None, upsampling=None)
    params2 = init_params(cfg2, seed=7)
    fwd2 = jax.jit(lambda p, v: vqvae_layer_forward(p, v, cfg2))
    out2 = jax.block_until_ready(fwd2(params2, x))
    assert out2.shape == (2, 16, 16, 16), out2.shape
    ref2 = jax.block_until_ready(reference_forward(params2, x, cfg2))
    np.testing.assert_allclose(np.asarray(out2), np.asarray(ref2), rtol=RTOL, atol=ATOL)

    # config 3: encoder-style block (2x2 average pooling); exercises the pooled
    # row path and the pooled/projected epilogue matrices.
    cfg3 = VQVAELayerConfig(input_dim=4, middle_dim=8, output_dim=8,
                            pooling=2, upsampling=None)
    params3 = init_params(cfg3, seed=11)
    fwd3 = jax.jit(lambda p, v: vqvae_layer_forward(p, v, cfg3))
    out3 = jax.block_until_ready(fwd3(params3, x))
    assert out3.shape == (2, 8, 8, 8), out3.shape
    ref3 = jax.block_until_ready(reference_forward(params3, x, cfg3))
    np.testing.assert_allclose(np.asarray(out3), np.asarray(ref3), rtol=RTOL, atol=ATOL)

    print("KERNEL_OK")
</pallas_src>

<mosaic_0001>
module attributes {stable_mosaic.version = 11 : i64} {
  func.func @_vqvae_fused_kernel(%arg0: i32, %arg1: i32, %arg2: memref<1x8x64xf32, #tpu.memory_space<vmem>>, %arg3: memref<1x8x64xf32, #tpu.memory_space<vmem>>, %arg4: memref<1x8x64xf32, #tpu.memory_space<vmem>>, %arg5: memref<64x256xf32, #tpu.memory_space<vmem>>, %arg6: memref<1x256xf32, #tpu.memory_space<vmem>>, %arg7: memref<768x256xf32, #tpu.memory_space<vmem>>, %arg8: memref<1x256xf32, #tpu.memory_space<vmem>>, %arg9: memref<320x256xf32, #tpu.memory_space<vmem>>, %arg10: memref<1x256xf32, #tpu.memory_space<vmem>>, %arg11: memref<1x16x256xf32, #tpu.memory_space<vmem>>) attributes {dimension_semantics = [#tpu.dimension_semantics<parallel>, #tpu.dimension_semantics<parallel>], iteration_bounds = array<i64: 2, 2>, scalar_prefetch = 0 : i64, scratch_operands = 0 : i64, tpu.core_type = #tpu.core_type<tc>, window_params = [{transform_indices = @transform_0, window_bounds = array<i64: 1, 8, 64>}, {transform_indices = @transform_1, window_bounds = array<i64: 1, 8, 64>}, {transform_indices = @transform_2, window_bounds = array<i64: 1, 8, 64>}, {pipeline_mode = #tpu.pipeline_mode<synchronous>, transform_indices = @transform_3, window_bounds = array<i64: 64, 256>}, {pipeline_mode = #tpu.pipeline_mode<synchronous>, transform_indices = @transform_4, window_bounds = array<i64: 1, 256>}, {pipeline_mode = #tpu.pipeline_mode<synchronous>, transform_indices = @transform_5, window_bounds = array<i64: 768, 256>}, {pipeline_mode = #tpu.pipeline_mode<synchronous>, transform_indices = @transform_6, window_bounds = array<i64: 1, 256>}, {pipeline_mode = #tpu.pipeline_mode<synchronous>, transform_indices = @transform_7, window_bounds = array<i64: 320, 256>}, {pipeline_mode = #tpu.pipeline_mode<synchronous>, transform_indices = @transform_8, window_bounds = array<i64: 1, 256>}, {transform_indices = @transform_9, window_bounds = array<i64: 1, 16, 256>}]} {
    %c0 = arith.constant 0 : index
    %c0_0 = arith.constant 0 : index
    %c0_1 = arith.constant 0 : index
    %0 = vector.load %arg2[%c0, %c0_0, %c0_1] : memref<1x8x64xf32, #tpu.memory_space<vmem>>, vector<1x8x64xf32>
    %1 = vector.shape_cast %0 : vector<1x8x64xf32> to vector<8x64xf32>
    %c0_2 = arith.constant 0 : index
    %c0_3 = arith.constant 0 : index
    %c0_4 = arith.constant 0 : index
    %2 = vector.load %arg3[%c0_2, %c0_3, %c0_4] : memref<1x8x64xf32, #tpu.memory_space<vmem>>, vector<1x8x64xf32>
    %3 = vector.shape_cast %2 : vector<1x8x64xf32> to vector<8x64xf32>
    %4 = vector.extract_strided_slice %3 {offsets = [7, 0], sizes = [1, 64], strides = [1, 1]} : vector<8x64xf32> to vector<1x64xf32>
    %c0_5 = arith.constant 0 : index
    %c0_6 = arith.constant 0 : index
    %c0_7 = arith.constant 0 : index
    %5 = vector.load %arg4[%c0_5, %c0_6, %c0_7] : memref<1x8x64xf32, #tpu.memory_space<vmem>>, vector<1x8x64xf32>
    %6 = vector.shape_cast %5 : vector<1x8x64xf32> to vector<8x64xf32>
    %7 = vector.extract_strided_slice %6 {offsets = [0, 0], sizes = [1, 64], strides = [1, 1]} : vector<8x64xf32> to vector<1x64xf32>
    %8 = tpu.concatenate %4, %1, %7 in 0 : vector<1x64xf32>, vector<8x64xf32>, vector<1x64xf32> -> vector<10x64xf32>
    %cst = arith.constant 0.000000e+00 : f32
    %9 = vector.broadcast %cst : f32 to vector<10x64xf32>
    %10 = arith.maximumf %8, %9 : vector<10x64xf32>
    %c0_8 = arith.constant 0 : index
    %c0_9 = arith.constant 0 : index
    %11 = vector.load %arg5[%c0_8, %c0_9] : memref<64x256xf32, #tpu.memory_space<vmem>>, vector<64x256xf32>
    %cst_10 = arith.constant dense<0.000000e+00> : vector<10x256xf32>
    %12 = tpu.matmul %10, %11, %cst_10 {dimension_numbers = #tpu.dot_dimension_numbers<[1], [0], [0], [1], [0, 0, 1, 1], [], []>} : vector<10x64xf32>, vector<64x256xf32>, vector<10x256xf32> -> vector<10x256xf32>
    %c0_11 = arith.constant 0 : index
    %c0_12 = arith.constant 0 : index
    %13 = vector.load %arg6[%c0_11, %c0_12] : memref<1x256xf32, #tpu.memory_space<vmem>>, vector<1x256xf32>
    %14 = vector.broadcast %13 : vector<1x256xf32> to vector<10x256xf32>
    %15 = arith.addf %12, %14 : vector<10x256xf32>
    %cst_13 = arith.constant 0.000000e+00 : f32
    %16 = vector.broadcast %cst_13 : f32 to vector<10x256xf32>
    %17 = arith.maximumf %15, %16 : vector<10x256xf32>
    %c0_i32 = arith.constant 0 : i32
    %18 = arith.cmpi sgt, %arg1, %c0_i32 : i32
    %19 = arith.extui %18 : i1 to i32
    %20 = arith.sitofp %19 : i32 to f32
    %c1_i32 = arith.constant 1 : i32
    %21 = arith.cmpi slt, %arg1, %c1_i32 : i32
    %22 = arith.extui %21 : i1 to i32
    %23 = arith.sitofp %22 : i32 to f32
    %24 = vector.extract_strided_slice %17 {offsets = [0, 0], sizes = [1, 256], strides = [1, 1]} : vector<10x256xf32> to vector<1x256xf32>
    %25 = vector.broadcast %20 : f32 to vector<1x256xf32>
    %26 = arith.mulf %24, %25 : vector<1x256xf32>
    %27 = vector.extract_strided_slice %17 {offsets = [9, 0], sizes = [1, 256], strides = [1, 1]} : vector<10x256xf32> to vector<1x256xf32>
    %28 = vector.broadcast %23 : f32 to vector<1x256xf32>
    %29 = arith.mulf %27, %28 : vector<1x256xf32>
    %30 = vector.extract_strided_slice %17 {offsets = [1, 0], sizes = [8, 256], strides = [1, 1]} : vector<10x256xf32> to vector<8x256xf32>
    %31 = vector.shape_cast %30 : vector<8x256xf32> to vector<8x1x256xf32>
    %32 = vector.shape_cast %31 : vector<8x1x256xf32> to vector<8x1x256xf32>
    %33 = vector.broadcast %32 : vector<8x1x256xf32> to vector<8x2x256xf32>
    %34 = vector.shape_cast %33 : vector<8x2x256xf32> to vector<16x256xf32>
    %35 = tpu.concatenate %26, %34, %29 in 0 : vector<1x256xf32>, vector<16x256xf32>, vector<1x256xf32> -> vector<18x256xf32>
    %36 = vector.extract_strided_slice %35 {offsets = [0, 0], sizes = [16, 256], strides = [1, 1]} : vector<18x256xf32> to vector<16x256xf32>
    %37 = vector.extract_strided_slice %35 {offsets = [1, 0], sizes = [16, 256], strides = [1, 1]} : vector<18x256xf32> to vector<16x256xf32>
    %38 = vector.extract_strided_slice %35 {offsets = [2, 0], sizes = [16, 256], strides = [1, 1]} : vector<18x256xf32> to vector<16x256xf32>
    %39 = tpu.concatenate %36, %37, %38 in 1 : vector<16x256xf32>, vector<16x256xf32>, vector<16x256xf32> -> vector<16x768xf32>
    %c0_14 = arith.constant 0 : index
    %c0_15 = arith.constant 0 : index
    %40 = vector.load %arg7[%c0_14, %c0_15] : memref<768x256xf32, #tpu.memory_space<vmem>>, vector<768x256xf32>
    %cst_16 = arith.constant dense<0.000000e+00> : vector<16x256xf32>
    %41 = tpu.matmul %39, %40, %cst_16 {dimension_numbers = #tpu.dot_dimension_numbers<[1], [0], [0], [1], [0, 0, 1, 1], [], []>} : vector<16x768xf32>, vector<768x256xf32>, vector<16x256xf32> -> vector<16x256xf32>
    %c0_17 = arith.constant 0 : index
    %c0_18 = arith.constant 0 : index
    %42 = vector.load %arg8[%c0_17, %c0_18] : memref<1x256xf32, #tpu.memory_space<vmem>>, vector<1x256xf32>
    %43 = vector.broadcast %42 : vector<1x256xf32> to vector<16x256xf32>
    %44 = arith.addf %41, %43 : vector<16x256xf32>
    %cst_19 = arith.constant 0.000000e+00 : f32
    %45 = vector.broadcast %cst_19 : f32 to vector<16x256xf32>
    %46 = arith.maximumf %44, %45 : vector<16x256xf32>
    %47 = vector.shape_cast %1 : vector<8x64xf32> to vector<8x1x64xf32>
    %48 = vector.shape_cast %47 : vector<8x1x64xf32> to vector<8x1x64xf32>
    %49 = vector.broadcast %48 : vector<8x1x64xf32> to vector<8x2x64xf32>
    %50 = vector.shape_cast %49 : vector<8x2x64xf32> to vector<16x64xf32>
    %51 = tpu.concatenate %46, %50 in 1 : vector<16x256xf32>, vector<16x64xf32> -> vector<16x320xf32>
    %c0_20 = arith.constant 0 : index
    %c0_21 = arith.constant 0 : index
    %52 = vector.load %arg9[%c0_20, %c0_21] : memref<320x256xf32, #tpu.memory_space<vmem>>, vector<320x256xf32>
    %cst_22 = arith.constant dense<0.000000e+00> : vector<16x256xf32>
    %53 = tpu.matmul %51, %52, %cst_22 {dimension_numbers = #tpu.dot_dimension_numbers<[1], [0], [0], [1], [0, 0, 1, 1], [], []>} : vector<16x320xf32>, vector<320x256xf32>, vector<16x256xf32> -> vector<16x256xf32>
    %c0_23 = arith.constant 0 : index
    %c0_24 = arith.constant 0 : index
    %54 = vector.load %arg10[%c0_23, %c0_24] : memref<1x256xf32, #tpu.memory_space<vmem>>, vector<1x256xf32>
    %55 = vector.broadcast %54 : vector<1x256xf32> to vector<16x256xf32>
    %56 = arith.addf %53, %55 : vector<16x256xf32>
    %c0_25 = arith.constant 0 : index
    %c0_26 = arith.constant 0 : index
    %c0_27 = arith.constant 0 : index
    %57 = vector.load %arg11[%c0_25, %c0_26, %c0_27] : memref<1x16x256xf32, #tpu.memory_space<vmem>>, vector<1x16x256xf32>
    %58 = vector.shape_cast %57 : vector<1x16x256xf32> to vector<16x256xf32>
    %59 = vector.shape_cast %56 : vector<16x256xf32> to vector<1x16x256xf32>
    tpu.vector_store %arg11[%c0_25, %c0_26, %c0_27], %59 {strides = array<i32>} : memref<1x16x256xf32, #tpu.memory_space<vmem>>, vector<1x16x256xf32>,
    return
  }
  func.func @transform_0(%arg0: i32, %arg1: i32) -> (i32, i32, i32) {
    %c0_i32 = arith.constant 0 : i32
    %c0_i32_0 = arith.constant 0 : i32
    return %arg0, %arg1, %c0_i32 : i32, i32, i32
  }
  func.func @transform_1(%arg0: i32, %arg1: i32) -> (i32, i32, i32) {
    %c1_i32 = arith.constant 1 : i32
    %0 = arith.subi %arg1, %c1_i32 : i32
    %c0_i32 = arith.constant 0 : i32
    %1 = arith.maxsi %0, %c0_i32 : i32
    %c0_i32_0 = arith.constant 0 : i32
    %c0_i32_1 = arith.constant 0 : i32
    return %arg0, %1, %c0_i32_0 : i32, i32, i32
  }
  func.func @transform_2(%arg0: i32, %arg1: i32) -> (i32, i32, i32) {
    %c1_i32 = arith.constant 1 : i32
    %0 = arith.addi %arg1, %c1_i32 : i32
    %c1_i32_0 = arith.constant 1 : i32
    %1 = arith.minsi %0, %c1_i32_0 : i32
    %c0_i32 = arith.constant 0 : i32
    %c0_i32_1 = arith.constant 0 : i32
    return %arg0, %1, %c0_i32 : i32, i32, i32
  }
  func.func @transform_3(%arg0: i32, %arg1: i32) -> (i32, i32) {
    %c0_i32 = arith.constant 0 : i32
    %c0_i32_0 = arith.constant 0 : i32
    %c0_i32_1 = arith.constant 0 : i32
    return %c0_i32, %c0_i32_0 : i32, i32
  }
  func.func @transform_4(%arg0: i32, %arg1: i32) -> (i32, i32) {
    %c0_i32 = arith.constant 0 : i32
    %c0_i32_0 = arith.constant 0 : i32
    %c0_i32_1 = arith.constant 0 : i32
    return %c0_i32, %c0_i32_0 : i32, i32
  }
  func.func @transform_5(%arg0: i32, %arg1: i32) -> (i32, i32) {
    %c0_i32 = arith.constant 0 : i32
    %c0_i32_0 = arith.constant 0 : i32
    %c0_i32_1 = arith.constant 0 : i32
    return %c0_i32, %c0_i32_0 : i32, i32
  }
  func.func @transform_6(%arg0: i32, %arg1: i32) -> (i32, i32) {
    %c0_i32 = arith.constant 0 : i32
    %c0_i32_0 = arith.constant 0 : i32
    %c0_i32_1 = arith.constant 0 : i32
    return %c0_i32, %c0_i32_0 : i32, i32
  }
  func.func @transform_7(%arg0: i32, %arg1: i32) -> (i32, i32) {
    %c0_i32 = arith.constant 0 : i32
    %c0_i32_0 = arith.constant 0 : i32
    %c0_i32_1 = arith.constant 0 : i32
    return %c0_i32, %c0_i32_0 : i32, i32
  }
  func.func @transform_8(%arg0: i32, %arg1: i32) -> (i32, i32) {
    %c0_i32 = arith.constant 0 : i32
    %c0_i32_0 = arith.constant 0 : i32
    %c0_i32_1 = arith.constant 0 : i32
    return %c0_i32, %c0_i32_0 : i32, i32
  }
  func.func @transform_9(%arg0: i32, %arg1: i32) -> (i32, i32, i32) {
    %c0_i32 = arith.constant 0 : i32
    %c0_i32_0 = arith.constant 0 : i32
    return %arg0, %arg1, %c0_i32 : i32, i32, i32
  }
}

</mosaic_0001>

<llo_original>
// kernel: _lambda_.1
$region0: #{_lambda_.1}
  #allocation0 [shape = 'u32[]', space=smem, size = 0x4, offset = 0x4, fixed_abs, tag = 'smem constant byte address 0x4 - core index']
  #allocation1 [shape = 'u32[72,128]{1,0:T(1,128)}', space=vmem, size = 0x9000, scoped, tag = 'internal scratch']
  %s0 = inlined_call_operand.vmem [shape: f32[2,16,64], index: 0, kind: input, shape index: {}, may-alias: {0,1,2}]
  %s1 = inlined_call_operand.vmem [shape: f32[2,16,64], index: 1, kind: input, shape index: {}, may-alias: {0,1,2}]
  %s2 = inlined_call_operand.vmem [shape: f32[2,16,64], index: 2, kind: input, shape index: {}, may-alias: {0,1,2}]
  %s3 = inlined_call_operand.vmem [shape: f32[64,256], index: 3, kind: input, shape index: {}]
  %s4 = inlined_call_operand.vmem [shape: f32[1,256], index: 4, kind: input, shape index: {}]
  %s5 = inlined_call_operand.vmem [shape: f32[768,256], index: 5, kind: input, shape index: {}]
  %s6 = inlined_call_operand.vmem [shape: f32[1,256], index: 6, kind: input, shape index: {}]
  %s7 = inlined_call_operand.vmem [shape: f32[320,256], index: 7, kind: input, shape index: {}]
  %s8 = inlined_call_operand.vmem [shape: f32[1,256], index: 8, kind: input, shape index: {}]
  %s9 = inlined_call_operand.vmem [shape: f32[2,32,256], index: 9, kind: output, shape index: {}]
  %s10 = sld [smem:[#allocation0]]
  $region69: #{_lambda_.1} parent=0
    _
  %s12 = ssub.s32 1, %s10
  %s13 = scalar_select 0, %s12, %s10
  loop: start=0, step=1, limit=6
  $region2: #{_lambda_.1} parent=0 // loop_pre_header
    _
  $region3: #{_lambda_.1} parent=0 // loop_header
    %s15 = sphi 0, %s19
    %p16 = scmp.ge.s32.totalorder %s15, 6
    %s22 = sphi 0, %s34
    %s23 = sphi 0, %s30
    %s24 = sphi 0, %s22
    %s25 = sphi 0, %s23
    %s26 = sphi 0, %s24
    %s27 = sphi 0, %s25
    %s39 = sphi 0, %s41
    %s42 = sphi 0, %s39
    %s43 = sphi 0, %s42
    %s59 = sphi 0, %s43
    %s73 = sphi 0, %s75
    %s76 = sphi 0, %s73
    %s77 = sphi 0, %s76
    %s93 = sphi 0, %s77
    %s107 = sphi 0, %s109
    %s110 = sphi 0, %s107
    %s111 = sphi 0, %s110
    %s127 = sphi 0, %s111
    %s131 = sphi 0, %s131
    %s133 = sphi 0, %s131
    %s134 = sphi 0, %s133
    %s148 = sphi 0, %s134
    %s152 = sphi 0, %s152
    %s154 = sphi 0, %s152
    %s155 = sphi 0, %s154
    %s169 = sphi 0, %s155
    %s173 = sphi 0, %s173
    %s175 = sphi 0, %s173
    %s176 = sphi 0, %s175
    %s190 = sphi 0, %s176
    %s194 = sphi 0, %s194
    %s196 = sphi 0, %s194
    %s197 = sphi 0, %s196
    %s211 = sphi 0, %s197
    %s215 = sphi 0, %s215
    %s217 = sphi 0, %s215
    %s218 = sphi 0, %s217
    %s232 = sphi 0, %s218
    %s236 = sphi 0, %s236
    %s238 = sphi 0, %s236
    %s239 = sphi 0, %s238
    %s253 = sphi 0, %s239
    %s261 = sphi 0, %s263
    %s264 = sphi 0, %s261
    %s265 = sphi 0, %s264
    %s281 = sphi 0, %s265
  $region4: #{_lambda_.1} parent=0 // loop_header_branch
    %18 = sbr.rel (%p16) target = $region8
  $region5: #{_lambda_.1} parent=0 // loop_body
    %s20 = ssub.s32 %s15, 1
    %s21 = ssub.s32 %s15, 2
    %s28 = sadd.s32 1, %s23
    %p29 = scmp.ge.s32.totalorder %s28, 2
    %s30 = scalar_select %p29, 0, %s28
    %s31 = sadd.s32 1, %s22
    %s32 = scalar_select %p29, %s31, %s22
    %p33 = scmp.ge.s32.totalorder %s32, 2
    %s34 = scalar_select %p33, 0, %s32
    %s35 = ssub.s32 %s22, %s34
    %s36 = ssub.s32 %s23, %s30
    %s37 = sor.u32 %s35, %s36
    %p38 = scmp.eq.s32.totalorder %s37, 0
    %s40 = sadd.s32 %s39, 1
    %s41 = scalar_select %p38, %s39, %s40
    %p44 = pneg %p38
    %p45 = scmp.eq.s32.totalorder %s15, 3
    %p46 = por %p44, %p45
    %p47 = scmp.ne.s32.totalorder %s39, %s42
    %p48 = scmp.eq.s32.totalorder %s15, 0
    %p49 = por %p47, %p48
    %p50 = scmp.ne.s32.totalorder %s39, %s42
    %p51 = scmp.eq.s32.totalorder %s20, 3
    %p52 = por %p50, %p51
    %p53 = scmp.ne.s32.totalorder %s42, %s43
    %p54 = scmp.eq.s32.totalorder %s20, 0
    %p55 = por %p53, %p54
    %p56 = scmp.ne.s32.totalorder %s42, %s43
    %p57 = scmp.eq.s32.totalorder %s21, 3
    %p58 = por %p56, %p57
    %p60 = scmp.ne.s32.totalorder %s43, %s59
    %p61 = scmp.eq.s32.totalorder %s21, 0
    %p62 = por %p60, %p61
    %s63 = ssub.s32 %s23, 1
    %p64 = scmp.gt.s32.totalorder %s63, 0
    %s65 = scalar_select %p64, %s63, 0
    %s66 = ssub.s32 %s30, 1
    %p67 = scmp.gt.s32.totalorder %s66, 0
    %s68 = scalar_select %p67, %s66, 0
    %s69 = ssub.s32 %s22, %s34
    %s70 = ssub.s32 %s65, %s68
    %s71 = sor.u32 %s69, %s70
    %p72 = scmp.eq.s32.totalorder %s71, 0
    %s74 = sadd.s32 %s73, 1
    %s75 = scalar_select %p72, %s73, %s74
    %p78 = pneg %p72
    %p79 = scmp.eq.s32.totalorder %s15, 3
    %p80 = por %p78, %p79
    %p81 = scmp.ne.s32.totalorder %s73, %s76
    %p82 = scmp.eq.s32.totalorder %s15, 0
    %p83 = por %p81, %p82
    %p84 = scmp.ne.s32.totalorder %s73, %s76
    %p85 = scmp.eq.s32.totalorder %s20, 3
    %p86 = por %p84, %p85
    %p87 = scmp.ne.s32.totalorder %s76, %s77
    %p88 = scmp.eq.s32.totalorder %s20, 0
    %p89 = por %p87, %p88
    %p90 = scmp.ne.s32.totalorder %s76, %s77
    %p91 = scmp.eq.s32.totalorder %s21, 3
    %p92 = por %p90, %p91
    %p94 = scmp.ne.s32.totalorder %s77, %s93
    %p95 = scmp.eq.s32.totalorder %s21, 0
    %p96 = por %p94, %p95
    %s97 = sadd.s32 %s23, 1
    %p98 = scmp.lt.s32.totalorder %s97, 1
    %s99 = scalar_select %p98, %s97, 1
    %s100 = sadd.s32 %s30, 1
    %p101 = scmp.lt.s32.totalorder %s100, 1
    %s102 = scalar_select %p101, %s100, 1
    %s103 = ssub.s32 %s22, %s34
    %s104 = ssub.s32 %s99, %s102
    %s105 = sor.u32 %s103, %s104
    %p106 = scmp.eq.s32.totalorder %s105, 0
    %s108 = sadd.s32 %s107, 1
    %s109 = scalar_select %p106, %s107, %s108
    %p112 = pneg %p106
    %p113 = scmp.eq.s32.totalorder %s15, 3
    %p114 = por %p112, %p113
    %p115 = scmp.ne.s32.totalorder %s107, %s110
    %p116 = scmp.eq.s32.totalorder %s15, 0
    %p117 = por %p115, %p116
    %p118 = scmp.ne.s32.totalorder %s107, %s110
    %p119 = scmp.eq.s32.totalorder %s20, 3
    %p120 = por %p118, %p119
    %p121 = scmp.ne.s32.totalorder %s110, %s111
    %p122 = scmp.eq.s32.totalorder %s20, 0
    %p123 = por %p121, %p122
    %p124 = scmp.ne.s32.totalorder %s110, %s111
    %p125 = scmp.eq.s32.totalorder %s21, 3
    %p126 = por %p124, %p125
    %p128 = scmp.ne.s32.totalorder %s111, %s127
    %p129 = scmp.eq.s32.totalorder %s21, 0
    %p130 = por %p128, %p129
    %s132 = sadd.s32 %s131, 1
    %p135 = scmp.eq.s32.totalorder %s15, 3
    %p136 = scmp.ne.s32.totalorder %s131, %s133
    %p137 = scmp.eq.s32.totalorder %s15, 0
    %p138 = por %p136, %p137
    %p139 = scmp.ne.s32.totalorder %s131, %s133
    %p140 = scmp.eq.s32.totalorder %s20, 3
    %p141 = por %p139, %p140
    %p142 = scmp.ne.s32.totalorder %s133, %s134
    %p143 = scmp.eq.s32.totalorder %s20, 0
    %p144 = por %p142, %p143
    %p145 = scmp.ne.s32.totalorder %s133, %s134
    %p146 = scmp.eq.s32.totalorder %s21, 3
    %p147 = por %p145, %p146
    %p149 = scmp.ne.s32.totalorder %s134, %s148
    %p150 = scmp.eq.s32.totalorder %s21, 0
    %p151 = por %p149, %p150
    %s153 = sadd.s32 %s152, 1
    %p156 = scmp.eq.s32.totalorder %s15, 3
    %p157 = scmp.ne.s32.totalorder %s152, %s154
    %p158 = scmp.eq.s32.totalorder %s15, 0
    %p159 = por %p157, %p158
    %p160 = scmp.ne.s32.totalorder %s152, %s154
    %p161 = scmp.eq.s32.totalorder %s20, 3
    %p162 = por %p160, %p161
    %p163 = scmp.ne.s32.totalorder %s154, %s155
    %p164 = scmp.eq.s32.totalorder %s20, 0
    %p165 = por %p163, %p164
    %p166 = scmp.ne.s32.totalorder %s154, %s155
    %p167 = scmp.eq.s32.totalorder %s21, 3
    %p168 = por %p166, %p167
    %p170 = scmp.ne.s32.totalorder %s155, %s169
    %p171 = scmp.eq.s32.totalorder %s21, 0
    %p172 = por %p170, %p171
    %s174 = sadd.s32 %s173, 1
    %p177 = scmp.eq.s32.totalorder %s15, 3
    %p178 = scmp.ne.s32.totalorder %s173, %s175
    %p179 = scmp.eq.s32.totalorder %s15, 0
    %p180 = por %p178, %p179
    %p181 = scmp.ne.s32.totalorder %s173, %s175
    %p182 = scmp.eq.s32.totalorder %s20, 3
    %p183 = por %p181, %p182
    %p184 = scmp.ne.s32.totalorder %s175, %s176
    %p185 = scmp.eq.s32.totalorder %s20, 0
    %p186 = por %p184, %p185
    %p187 = scmp.ne.s32.totalorder %s175, %s176
    %p188 = scmp.eq.s32.totalorder %s21, 3
    %p189 = por %p187, %p188
    %p191 = scmp.ne.s32.totalorder %s176, %s190
    %p192 = scmp.eq.s32.totalorder %s21, 0
    %p193 = por %p191, %p192
    %s195 = sadd.s32 %s194, 1
    %p198 = scmp.eq.s32.totalorder %s15, 3
    %p199 = scmp.ne.s32.totalorder %s194, %s196
    %p200 = scmp.eq.s32.totalorder %s15, 0
    %p201 = por %p199, %p200
    %p202 = scmp.ne.s32.totalorder %s194, %s196
    %p203 = scmp.eq.s32.totalorder %s20, 3
    %p204 = por %p202, %p203
    %p205 = scmp.ne.s32.totalorder %s196, %s197
    %p206 = scmp.eq.s32.totalorder %s20, 0
    %p207 = por %p205, %p206
    %p208 = scmp.ne.s32.totalorder %s196, %s197
    %p209 = scmp.eq.s32.totalorder %s21, 3
    %p210 = por %p208, %p209
    %p212 = scmp.ne.s32.totalorder %s197, %s211
    %p213 = scmp.eq.s32.totalorder %s21, 0
    %p214 = por %p212, %p213
    %s216 = sadd.s32 %s215, 1
    %p219 = scmp.eq.s32.totalorder %s15, 3
    %p220 = scmp.ne.s32.totalorder %s215, %s217
    %p221 = scmp.eq.s32.totalorder %s15, 0
    %p222 = por %p220, %p221
    %p223 = scmp.ne.s32.totalorder %s215, %s217
    %p224 = scmp.eq.s32.totalorder %s20, 3
    %p225 = por %p223, %p224
    %p226 = scmp.ne.s32.totalorder %s217, %s218
    %p227 = scmp.eq.s32.totalorder %s20, 0
    %p228 = por %p226, %p227
    %p229 = scmp.ne.s32.totalorder %s217, %s218
    %p230 = scmp.eq.s32.totalorder %s21, 3
    %p231 = por %p229, %p230
    %p233 = scmp.ne.s32.totalorder %s218, %s232
    %p234 = scmp.eq.s32.totalorder %s21, 0
    %p235 = por %p233, %p234
    %s237 = sadd.s32 %s236, 1
    %p240 = scmp.eq.s32.totalorder %s15, 3
    %p241 = scmp.ne.s32.totalorder %s236, %s238
    %p242 = scmp.eq.s32.totalorder %s15, 0
    %p243 = por %p241, %p242
    %p244 = scmp.ne.s32.totalorder %s236, %s238
    %p245 = scmp.eq.s32.totalorder %s20, 3
    %p246 = por %p244, %p245
    %p247 = scmp.ne.s32.totalorder %s238, %s239
    %p248 = scmp.eq.s32.totalorder %s20, 0
    %p249 = por %p247, %p248
    %p250 = scmp.ne.s32.totalorder %s238, %s239
    %p251 = scmp.eq.s32.totalorder %s21, 3
    %p252 = por %p250, %p251
    %p254 = scmp.ne.s32.totalorder %s239, %s253
    %p255 = scmp.eq.s32.totalorder %s21, 0
    %p256 = por %p254, %p255
    %s257 = ssub.s32 %s22, %s34
    %s258 = ssub.s32 %s23, %s30
    %s259 = sor.u32 %s257, %s258
    %p260 = scmp.eq.s32.totalorder %s259, 0
    %s262 = sadd.s32 %s261, 1
    %s263 = scalar_select %p260, %s261, %s262
    %p266 = pneg %p260
    %p267 = scmp.eq.s32.totalorder %s15, 3
    %p268 = por %p266, %p267
    %p269 = scmp.ne.s32.totalorder %s261, %s264
    %p270 = scmp.eq.s32.totalorder %s15, 0
    %p271 = por %p269, %p270
    %p272 = scmp.ne.s32.totalorder %s261, %s264
    %p273 = scmp.eq.s32.totalorder %s20, 3
    %p274 = por %p272, %p273
    %p275 = scmp.ne.s32.totalorder %s264, %s265
    %p276 = scmp.eq.s32.totalorder %s20, 0
    %p277 = por %p275, %p276
    %p278 = scmp.ne.s32.totalorder %s264, %s265
    %p279 = scmp.eq.s32.totalorder %s21, 3
    %p280 = por %p278, %p279
    %p282 = scmp.ne.s32.totalorder %s265, %s281
    %p283 = scmp.eq.s32.totalorder %s21, 0
    %p284 = por %p282, %p283
    %p285 = scmp.le.s32.totalorder 1, %s15
    %p286 = scmp.lt.s32.totalorder %s15, 5
    %p287 = pnand %p285, %p286
    %p288 = pneg %p287
    // Predicated region
    $region9: #{_lambda_.1} parent=5 // pred_check
      _
    $region10: #{_lambda_.1} parent=5 // pred_check_branch
      %290 = sbr.rel (%p287) target = $region12
    $region11: #{_lambda_.1} parent=5 // pred_region
      %s291 = ssub.s32 %s15, 1
      // Predicated region
      $region13: #{_lambda_.1} parent=11 // pred_check
        %p292 = pneg %p144
      $region14: #{_lambda_.1} parent=11 // pred_check_branch
        %294 = sbr.rel (%p292) target = $region16
      $region15: #{_lambda_.1} parent=11 // pred_region
        _
      $region16: #{_lambda_.1} parent=11 // pred_fallthru
        _
      // Predicated region
      $region17: #{_lambda_.1} parent=11 // pred_check
        %p295 = pneg %p165
      $region18: #{_lambda_.1} parent=11 // pred_check_branch
        %297 = sbr.rel (%p295) target = $region20
      $region19: #{_lambda_.1} parent=11 // pred_region
        _
      $region20: #{_lambda_.1} parent=11 // pred_fallthru
        _
      // Predicated region
      $region21: #{_lambda_.1} parent=11 // pred_check
        %p298 = pneg %p186
      $region22: #{_lambda_.1} parent=11 // pred_check_branch
        %300 = sbr.rel (%p298) target = $region24
      $region23: #{_lambda_.1} parent=11 // pred_region
        _
      $region24: #{_lambda_.1} parent=11 // pred_fallthru
        _
      // Predicated region
      $region25: #{_lambda_.1} parent=11 // pred_check
        %p301 = pneg %p207
      $region26: #{_lambda_.1} parent=11 // pred_check_branch
        %303 = sbr.rel (%p301) target = $region28
      $region27: #{_lambda_.1} parent=11 // pred_region
        _
      $region28: #{_lambda_.1} parent=11 // pred_fallthru
        _
      // Predicated region
      $region29: #{_lambda_.1} parent=11 // pred_check
        %p304 = pneg %p228
      $region30: #{_lambda_.1} parent=11 // pred_check_branch
        %306 = sbr.rel (%p304) target = $region32
      $region31: #{_lambda_.1} parent=11 // pred_region
        _
      $region32: #{_lambda_.1} parent=11 // pred_fallthru
        _
      // Predicated region
      $region33: #{_lambda_.1} parent=11 // pred_check
        %p307 = pneg %p249
      $region34: #{_lambda_.1} parent=11 // pred_check_branch
        %309 = sbr.rel (%p307) target = $region36
      $region35: #{_lambda_.1} parent=11 // pred_region
        _
      $region36: #{_lambda_.1} parent=11 // pred_fallthru
        _
    $region12: #{_lambda_.1} parent=5 // pred_fallthru
      _
    %p310 = scmp.lt.s32.totalorder %s15, 4
    // Predicated region
    $region37: #{_lambda_.1} parent=5 // pred_check
      %p311 = pneg %p310
    $region38: #{_lambda_.1} parent=5 // pred_check_branch
      %313 = sbr.rel (%p311) target = $region40
    $region39: #{_lambda_.1} parent=5 // pred_region
      // Predicated region
      $region41: #{_lambda_.1} parent=39 // pred_check
        %p314 = pneg %p49
      $region42: #{_lambda_.1} parent=39 // pred_check_branch
        %316 = sbr.rel (%p314) target = $region44
      $region43: #{_lambda_.1} parent=39 // pred_region
        %p317 = scmp.lt.s32.totalorder %s22, 1
        %s318 = scalar_select %p317, %s22, 1
        %p319 = scmp.lt.s32.totalorder %s23, 1
        %s320 = scalar_select %p319, %s23, 1
        %s321 = smul.addr %s318, 2
        %s322 = sadd.s32 %s320, %s321
        %s323 = smul.addr %s322, 8
        %s324 = scalar_lea.vmem %s0, %s323
      $region44: #{_lambda_.1} parent=39 // pred_fallthru
        _
      // Predicated region
      $region45: #{_lambda_.1} parent=39 // pred_check
        %p325 = pneg %p83
      $region46: #{_lambda_.1} parent=39 // pred_check_branch
        %327 = sbr.rel (%p325) target = $region48
      $region47: #{_lambda_.1} parent=39 // pred_region
        %s328 = ssub.s32 %s23, 1
        %p329 = scmp.gt.s32.totalorder %s328, 0
        %s330 = scalar_select %p329, %s328, 0
        %p331 = scmp.lt.s32.totalorder %s22, 1
        %s332 = scalar_select %p331, %s22, 1
        %p333 = scmp.lt.s32.totalorder %s330, 1
        %s334 = scalar_select %p333, %s330, 1
        %s335 = smul.addr %s332, 2
        %s336 = sadd.s32 %s334, %s335
        %s337 = smul.addr %s336, 8
        %s338 = scalar_lea.vmem %s1, %s337
        %s339 = ssub.s32 %s23, 1
        %p340 = scmp.gt.s32.totalorder %s339, 0
        %s341 = scalar_select %p340, %s339, 0
      $region48: #{_lambda_.1} parent=39 // pred_fallthru
        _
      // Predicated region
      $region49: #{_lambda_.1} parent=39 // pred_check
        %p342 = pneg %p117
      $region50: #{_lambda_.1} parent=39 // pred_check_branch
        %344 = sbr.rel (%p342) target = $region52
      $region51: #{_lambda_.1} parent=39 // pred_region
        %s345 = sadd.s32 %s23, 1
        %p346 = scmp.lt.s32.totalorder %s345, 1
        %s347 = scalar_select %p346, %s345, 1
        %p348 = scmp.lt.s32.totalorder %s22, 1
        %s349 = scalar_select %p348, %s22, 1
        %p350 = scmp.lt.s32.totalorder %s347, 1
        %s351 = scalar_select %p350, %s347, 1
        %s352 = smul.addr %s349, 2
        %s353 = sadd.s32 %s351, %s352
        %s354 = smul.addr %s353, 8
        %s355 = scalar_lea.vmem %s2, %s354
        %s356 = sadd.s32 %s23, 1
        %p357 = scmp.lt.s32.totalorder %s356, 1
        %s358 = scalar_select %p357, %s356, 1
      $region52: #{_lambda_.1} parent=39 // pred_fallthru
        _
    $region40: #{_lambda_.1} parent=5 // pred_fallthru
      _
    %p359 = scmp.le.s32.totalorder 1, %s15
    %p360 = scmp.lt.s32.totalorder %s15, 5
    %p361 = pnand %p359, %p360
    %p362 = pneg %p361
    // Predicated region
    $region53: #{_lambda_.1} parent=5 // pred_check
      _
    $region54: #{_lambda_.1} parent=5 // pred_check_branch
      %364 = sbr.rel (%p361) target = $region56
    $region55: #{_lambda_.1} parent=5 // pred_region
      %s365 = ssub.s32 %s15, 1
      %p366 = scmp.lt.s32.totalorder %s24, 1
      %s367 = scalar_select %p366, %s24, 1
      %p368 = scmp.lt.s32.totalorder %s25, 1
      %s369 = scalar_select %p368, %s25, 1
      %s370 = smul.addr %s367, 2
      %s371 = sadd.s32 %s369, %s370
      %s372 = smul.addr %s371, 8
      %s373 = scalar_lea.vmem %s0, %s372
      %p374 = pneg %p55
      %p375 = pneg %p52
      %s376 = ssub.s32 %s25, 1
      %p377 = scmp.gt.s32.totalorder %s376, 0
      %s378 = scalar_select %p377, %s376, 0
      %p379 = scmp.lt.s32.totalorder %s24, 1
      %s380 = scalar_select %p379, %s24, 1
      %p381 = scmp.lt.s32.totalorder %s378, 1
      %s382 = scalar_select %p381, %s378, 1
      %s383 = smul.addr %s380, 2
      %s384 = sadd.s32 %s382, %s383
      %s385 = smul.addr %s384, 8
      %s386 = scalar_lea.vmem %s1, %s385
      %p387 = pneg %p89
      %p388 = pneg %p86
      %s389 = sadd.s32 %s25, 1
      %p390 = scmp.lt.s32.totalorder %s389, 1
      %s391 = scalar_select %p390, %s389, 1
      %p392 = scmp.lt.s32.totalorder %s24, 1
      %s393 = scalar_select %p392, %s24, 1
      %p394 = scmp.lt.s32.totalorder %s391, 1
      %s395 = scalar_select %p394, %s391, 1
      %s396 = smul.addr %s393, 2
      %s397 = sadd.s32 %s395, %s396
      %s398 = smul.addr %s397, 8
      %s399 = scalar_lea.vmem %s2, %s398
      %p400 = pneg %p123
      %p401 = pneg %p120
      %p402 = pneg %p144
      %p403 = pneg %p141
      %p404 = pneg %p165
      %p405 = pneg %p162
      %p406 = pneg %p186
      %p407 = pneg %p183
      %p408 = pneg %p207
      %p409 = pneg %p204
      %p410 = pneg %p228
      %p411 = pneg %p225
      %p412 = pneg %p249
      %p413 = pneg %p246
      %p414 = pneg %p277
      %p415 = pneg %p274
      %s416 = smul.u32 2, %s25
      %p417 = scmp.lt.s32.totalorder %s24, 1
      %s418 = scalar_select %p417, %s24, 1
      %p419 = scmp.lt.s32.totalorder %s416, 3
      %s420 = scalar_select %p419, %s416, 3
      %s421 = smul.addr %s420, 2
      %s422 = smul.addr %s418, 8
      %s423 = sadd.s32 %s421, %s422
      %s424 = smul.addr %s423, 8
      %s425 = scalar_lea.vmem %s9, %s424
      %p426 = scmp.lt.s32.totalorder %s24, 1
      %s427 = scalar_select %p426, %s24, 1
      %p428 = scmp.lt.s32.totalorder %s25, 1
      %s429 = scalar_select %p428, %s25, 1
      %s430 = smul.addr %s427, 2
      %s431 = sadd.s32 %s429, %s430
      %s432 = smul.addr %s431, 8
      %s433 = scalar_lea.vmem %s0, %s432
      %s434 = ssub.s32 %s25, 1
      %p435 = scmp.gt.s32.totalorder %s434, 0
      %s436 = scalar_select %p435, %s434, 0
      %p437 = scmp.lt.s32.totalorder %s24, 1
      %s438 = scalar_select %p437, %s24, 1
      %p439 = scmp.lt.s32.totalorder %s436, 1
      %s440 = scalar_select %p439, %s436, 1
      %s441 = smul.addr %s438, 2
      %s442 = sadd.s32 %s440, %s441
      %s443 = smul.addr %s442, 8
      %s444 = scalar_lea.vmem %s1, %s443
      %s445 = ssub.s32 %s25, 1
      %p446 = scmp.gt.s32.totalorder %s445, 0
      %s447 = scalar_select %p446, %s445, 0
      %s448 = sadd.s32 %s25, 1
      %p449 = scmp.lt.s32.totalorder %s448, 1
      %s450 = scalar_select %p449, %s448, 1
      %p451 = scmp.lt.s32.totalorder %s24, 1
      %s452 = scalar_select %p451, %s24, 1
      %p453 = scmp.lt.s32.totalorder %s450, 1
      %s454 = scalar_select %p453, %s450, 1
      %s455 = smul.addr %s452, 2
      %s456 = sadd.s32 %s454, %s455
      %s457 = smul.addr %s456, 8
      %s458 = scalar_lea.vmem %s2, %s457
      %s459 = sadd.s32 %s25, 1
      %p460 = scmp.lt.s32.totalorder %s459, 1
      %s461 = scalar_select %p460, %s459, 1
      %s462 = smul.u32 2, %s25
      %p463 = scmp.lt.s32.totalorder %s24, 1
      %s464 = scalar_select %p463, %s24, 1
      %p465 = scmp.lt.s32.totalorder %s462, 3
      %s466 = scalar_select %p465, %s462, 3
      %s467 = smul.addr %s466, 2
      %s468 = smul.addr %s464, 8
      %s469 = sadd.s32 %s467, %s468
      %s470 = smul.addr %s469, 8
      %s471 = scalar_lea.vmem %s9, %s470
      %s472 = smul.u32 2, %s25
      %v473 = vld [vmem:[%s433] sm:$0xff]
      %v474 = vld [vmem:[%s444] sm:$0xff]
      %v475 = vld [vmem:[%s458] sm:$0xff]
      %v477 = vrot.slane %v474, 7
      %v480 = vrot.slane %v473, 7
      %v483 = vrot.slane %v475, 7
      %vm485 = vcmask 1040384
      %v486 = vsel %vm485, %v477, %v480
      %v487 = vsel %vm485, %v480, %v483
      %v488 = vmax.f32 %v486, 0.0
      %v489 = vmax.f32 %v487, 0.0
      %v490 = vld [vmem:[%s3] sm:$0xff]
      %v491 = vld [vmem:[%s3 + $0x8] sm:$0xff]
      %v492 = vld [vmem:[%s3 + $0x10] sm:$0xff]
      %v493 = vld [vmem:[%s3 + $0x18] sm:$0xff]
      %v494 = vld [vmem:[%s3 + $0x20] sm:$0xff]
      %v495 = vld [vmem:[%s3 + $0x28] sm:$0xff]
      %v496 = vld [vmem:[%s3 + $0x30] sm:$0xff]
      %v497 = vld [vmem:[%s3 + $0x38] sm:$0xff]
      %v498 = vld [vmem:[%s3 + $0x40] sm:$0xff]
      %v499 = vld [vmem:[%s3 + $0x48] sm:$0xff]
      %v500 = vld [vmem:[%s3 + $0x50] sm:$0xff]
      %v501 = vld [vmem:[%s3 + $0x58] sm:$0xff]
      %v502 = vld [vmem:[%s3 + $0x60] sm:$0xff]
      %v503 = vld [vmem:[%s3 + $0x68] sm:$0xff]
      %v504 = vld [vmem:[%s3 + $0x70] sm:$0xff]
      %v505 = vld [vmem:[%s3 + $0x78] sm:$0xff]
      %v506 = vld [vmem:[%s4] sm:$0x3]
      %v508 = vperm.slane %v506, 0
      %v509 = vperm.slane %v506, 1
      %vm512 = vcmask 523264
      %v514 = vsel %vm512, %v488, 0
      %v517 = vsel %vm512, %v489, 0
      %519 = vmatpush.msra.mxu0 0.0
      %520 = vmatpush.msra.mxu0 0.0
      %521 = vmatpush.msra.mxu0 0.0
      %522 = vmatpush.msra.mxu0 0.0
      %523 = vmatpush.msra.mxu0 0.0
      %524 = vmatpush.msra.mxu0 0.0
      %525 = vmatpush.msra.mxu0 0.0
      %526 = vmatpush.msra.mxu0 0.0
      %527 = vmatpush.msra.mxu0 %v504
      %528 = vmatpush.msra.mxu0 %v502
      %529 = vmatpush.msra.mxu0 %v500
      %530 = vmatpush.msra.mxu0 %v498
      %531 = vmatpush.msra.mxu0 %v496
      %532 = vmatpush.msra.mxu0 %v494
      %533 = vmatpush.msra.mxu0 %v492
      %534 = vmatpush.msra.mxu0 %v490
      %535 = vmatmul.f32.gmra.mxu0 %v514
      %v536 = vpop.f32.mrf.mxu0
      %v537 = vadd.f32 %v508, %v536
      %538 = vmatmul.f32.gmra.mxu0 %v517
      %v539 = vpop.f32.mrf.mxu0
      %v540 = vadd.f32 %v508, %v539
      %541 = vdwg.mxu0
      %542 = vmatpush.msra.mxu0 0.0
      %543 = vmatpush.msra.mxu0 0.0
      %544 = vmatpush.msra.mxu0 0.0
      %545 = vmatpush.msra.mxu0 0.0
      %546 = vmatpush.msra.mxu0 0.0
      %547 = vmatpush.msra.mxu0 0.0
      %548 = vmatpush.msra.mxu0 0.0
      %549 = vmatpush.msra.mxu0 0.0
      %550 = vmatpush.msra.mxu0 %v505
      %551 = vmatpush.msra.mxu0 %v503
      %552 = vmatpush.msra.mxu0 %v501
      %553 = vmatpush.msra.mxu0 %v499
      %554 = vmatpush.msra.mxu0 %v497
      %555 = vmatpush.msra.mxu0 %v495
      %556 = vmatpush.msra.mxu0 %v493
      %557 = vmatpush.msra.mxu0 %v491
      %558 = vmatmul.f32.gmra.mxu0 %v514
      %v559 = vpop.f32.mrf.mxu0
      %v560 = vadd.f32 %v509, %v559
      %561 = vmatmul.f32.gmra.mxu0 %v517
      %v562 = vpop.f32.mrf.mxu0
      %v563 = vadd.f32 %v509, %v562
      %564 = vdwg.mxu0
      %v565 = vmax.f32 %v537, 0.0
      %v566 = vmax.f32 %v560, 0.0
      %v567 = vmax.f32 %v540, 0.0
      %v568 = vmax.f32 %v563, 0.0
      %p569 = scmp.gt.s32.totalorder %s25, 0
      %s570 = scalar_select %p569, 1, 0
      %s571 = scvt.s32.f32 %s570
      %p572 = scmp.lt.s32.totalorder %s25, 1
      %s573 = scalar_select %p572, 1, 0
      %s574 = scvt.s32.f32 %s573
      %v575 = vstv %s571
      %v576 = vmul.f32 %v565, %v575
      %v577 = vmul.f32 %v566, %v575
      %v578 = vstv %s574
      %v579 = vmul.f32 %v567, %v578
      %v580 = vmul.f32 %v568, %v578
      %585 = vst [vmem:[#allocation1] sm:$0xff] %v565
      %586 = vst [vmem:[#allocation1 + $0x9] sm:$0xff] %v566
      %s587 = scalar_lea.vmem [#allocation1], 1
      %v588 = vld [vmem:[%s587] ss:$9 sm:$0xff]
      %s589 = scalar_lea.vmem [#allocation1], 2
      %v590 = vld [vmem:[%s589] ss:$9 sm:$0xff]
      %s591 = scalar_lea.vmem [#allocation1], 3
      %v592 = vld [vmem:[%s591] ss:$9 sm:$0xff]
      %s593 = scalar_lea.vmem [#allocation1], 4
      %v594 = vld [vmem:[%s593] ss:$9 sm:$0xff]
      %s595 = scalar_lea.vmem [#allocation1], 5
      %v596 = vld [vmem:[%s595] ss:$9 sm:$0xff]
      %s597 = scalar_lea.vmem [#allocation1], 6
      %v598 = vld [vmem:[%s597] ss:$9 sm:$0xff]
      %s599 = scalar_lea.vmem [#allocation1], 7
      %v600 = vld [vmem:[%s599] ss:$9 sm:$0xff]
      %601 = vst [vmem:[#allocation1] sm:$0xff] %v567
      %602 = vst [vmem:[#allocation1 + $0x9] sm:$0xff] %v568
      %v603 = vld [vmem:[#allocation1] ss:$9 sm:$0xff]
      %v604 = vperm.slane %v588, 0
      %v605 = vperm.slane %v588, 1
      %v606 = vperm.slane %v590, 0
      %v607 = vperm.slane %v590, 1
      %v608 = vperm.slane %v592, 0
      %v609 = vperm.slane %v592, 1
      %v610 = vperm.slane %v594, 0
      %v611 = vperm.slane %v594, 1
      %v612 = vperm.slane %v596, 0
      %v613 = vperm.slane %v596, 1
      %v614 = vperm.slane %v598, 0
      %v615 = vperm.slane %v598, 1
      %v616 = vperm.slane %v600, 0
      %v617 = vperm.slane %v600, 1
      %v618 = vperm.slane %v603, 0
      %v619 = vperm.slane %v603, 1
      %v620 = vrot.slane %v605, 6
      %v621 = vrot.slane %v607, 6
      %v622 = vrot.slane %v609, 6
      %v623 = vrot.slane %v611, 6
      %v624 = vrot.slane %v613, 6
      %v625 = vrot.slane %v615, 6
      %v626 = vrot.slane %v617, 6
      %v627 = vrot.slane %v619, 6
      %vm628 = vcmask 1041408
      %v629 = vsel %vm628, %v604, %v620
      %v630 = vsel %vm628, %v606, %v621
      %v631 = vsel %vm628, %v608, %v622
      %v632 = vsel %vm628, %v610, %v623
      %v633 = vsel %vm628, %v612, %v624
      %v634 = vsel %vm628, %v614, %v625
      %v635 = vsel %vm628, %v616, %v626
      %v636 = vsel %vm628, %v618, %v627
      %637 = vst [vmem:[#allocation1] ss:$4 sm:$0xff] %v629
      %s638 = scalar_lea.vmem [#allocation1], 1
      %639 = vst [vmem:[%s638] ss:$4 sm:$0xff] %v630
      %s640 = scalar_lea.vmem [#allocation1], 2
      %641 = vst [vmem:[%s640] ss:$4 sm:$0xff] %v631
      %s642 = scalar_lea.vmem [#allocation1], 3
      %643 = vst [vmem:[%s642] ss:$4 sm:$0xff] %v632
      %s644 = scalar_lea.vmem [#allocation1], 32
      %645 = vst [vmem:[%s644] ss:$4 sm:$0xff] %v633
      %s646 = scalar_lea.vmem [#allocation1], 33
      %647 = vst [vmem:[%s646] ss:$4 sm:$0xff] %v634
      %s648 = scalar_lea.vmem [#allocation1], 34
      %649 = vst [vmem:[%s648] ss:$4 sm:$0xff] %v635
      %s650 = scalar_lea.vmem [#allocation1], 35
      %651 = vst [vmem:[%s650] ss:$4 sm:$0xff] %v636
      %v652 = vld.sshfl [vmem:[#allocation1] sm:$0xff pattern:$0x73625140]
      %v653 = vld.sshfl [vmem:[#allocation1 + $0x8] sm:$0xff pattern:$0x73625140]
      %v654 = vld.sshfl [vmem:[#allocation1 + $0x20] sm:$0xff pattern:$0x73625140]
      %v655 = vld.sshfl [vmem:[#allocation1 + $0x28] sm:$0xff pattern:$0x73625140]
      %v656 = vrot.slane %v652, 7
      %v657 = vrot.slane %v653, 7
      %v658 = vrot.slane %v654, 7
      %v659 = vsel %vm485, %v656, %v658
      %v660 = vrot.slane %v655, 7
      %v661 = vsel %vm485, %v657, %v660
      %v668 = vsel %vm485, %v576, %v656
      %v669 = vsel %vm485, %v577, %v657
      %v670 = vsel %vm485, %v658, %v579
      %v671 = vsel %vm485, %v660, %v580
      %vm676 = vcmask 1046528
      %v677 = vrot.slane %v668, 1
      %v678 = vrot.slane %v659, 1
      %v679 = vsel %vm676, %v677, %v678
      %v680 = vrot.slane %v669, 1
      %v681 = vrot.slane %v661, 1
      %v682 = vsel %vm676, %v680, %v681
      %v683 = vrot.slane %v670, 1
      %v684 = vsel %vm676, %v678, %v683
      %v685 = vrot.slane %v671, 1
      %v686 = vsel %vm676, %v681, %v685
      %vm691 = vcmask 1045504
      %v692 = vrot.slane %v668, 2
      %v693 = vrot.slane %v659, 2
      %v694 = vsel %vm691, %v692, %v693
      %v695 = vrot.slane %v669, 2
      %v696 = vrot.slane %v661, 2
      %v697 = vsel %vm691, %v695, %v696
      %v698 = vrot.slane %v670, 2
      %v699 = vsel %vm691, %v693, %v698
      %v700 = vrot.slane %v671, 2
      %v701 = vsel %vm691, %v696, %v700
      %v706 = vld [vmem:[%s5] sm:$0xff]
      %v707 = vld [vmem:[%s5 + $0x8] sm:$0xff]
      %v708 = vld [vmem:[%s5 + $0x10] sm:$0xff]
      %v709 = vld [vmem:[%s5 + $0x18] sm:$0xff]
      %v710 = vld [vmem:[%s5 + $0x20] sm:$0xff]
      %v711 = vld [vmem:[%s5 + $0x28] sm:$0xff]
      %v712 = vld [vmem:[%s5 + $0x30] sm:$0xff]
      %v713 = vld [vmem:[%s5 + $0x38] sm:$0xff]
      %v714 = vld [vmem:[%s5 + $0x40] sm:$0xff]
      %v715 = vld [vmem:[%s5 + $0x48] sm:$0xff]
      %v716 = vld [vmem:[%s5 + $0x50] sm:$0xff]
      %v717 = vld [vmem:[%s5 + $0x58] sm:$0xff]
      %v718 = vld [vmem:[%s5 + $0x60] sm:$0xff]
      %v719 = vld [vmem:[%s5 + $0x68] sm:$0xff]
      %v720 = vld [vmem:[%s5 + $0x70] sm:$0xff]
      %v721 = vld [vmem:[%s5 + $0x78] sm:$0xff]
      %v722 = vld [vmem:[%s5 + $0x80] sm:$0xff]
      %v723 = vld [vmem:[%s5 + $0x88] sm:$0xff]
      %v724 = vld [vmem:[%s5 + $0x90] sm:$0xff]
      %v725 = vld [vmem:[%s5 + $0x98] sm:$0xff]
      %v726 = vld [vmem:[%s5 + $0xa0] sm:$0xff]
      %v727 = vld [vmem:[%s5 + $0xa8] sm:$0xff]
      %v728 = vld [vmem:[%s5 + $0xb0] sm:$0xff]
      %v729 = vld [vmem:[%s5 + $0xb8] sm:$0xff]
      %v730 = vld [vmem:[%s5 + $0xc0] sm:$0xff]
      %v731 = vld [vmem:[%s5 + $0xc8] sm:$0xff]
      %v732 = vld [vmem:[%s5 + $0xd0] sm:$0xff]
      %v733 = vld [vmem:[%s5 + $0xd8] sm:$0xff]
      %v734 = vld [vmem:[%s5 + $0xe0] sm:$0xff]
      %v735 = vld [vmem:[%s5 + $0xe8] sm:$0xff]
      %v736 = vld [vmem:[%s5 + $0xf0] sm:$0xff]
      %v737 = vld [vmem:[%s5 + $0xf8] sm:$0xff]
      %v738 = vld [vmem:[%s5 + $0x100] sm:$0xff]
      %v739 = vld [vmem:[%s5 + $0x108] sm:$0xff]
      %v740 = vld [vmem:[%s5 + $0x110] sm:$0xff]
      %v741 = vld [vmem:[%s5 + $0x118] sm:$0xff]
      %v742 = vld [vmem:[%s5 + $0x120] sm:$0xff]
      %v743 = vld [vmem:[%s5 + $0x128] sm:$0xff]
      %v744 = vld [vmem:[%s5 + $0x130] sm:$0xff]
      %v745 = vld [vmem:[%s5 + $0x138] sm:$0xff]
      %v746 = vld [vmem:[%s5 + $0x140] sm:$0xff]
      %v747 = vld [vmem:[%s5 + $0x148] sm:$0xff]
      %v748 = vld [vmem:[%s5 + $0x150] sm:$0xff]
      %v749 = vld [vmem:[%s5 + $0x158] sm:$0xff]
      %v750 = vld [vmem:[%s5 + $0x160] sm:$0xff]
      %v751 = vld [vmem:[%s5 + $0x168] sm:$0xff]
      %v752 = vld [vmem:[%s5 + $0x170] sm:$0xff]
      %v753 = vld [vmem:[%s5 + $0x178] sm:$0xff]
      %v754 = vld [vmem:[%s5 + $0x180] sm:$0xff]
      %v755 = vld [vmem:[%s5 + $0x188] sm:$0xff]
      %v756 = vld [vmem:[%s5 + $0x190] sm:$0xff]
      %v757 = vld [vmem:[%s5 + $0x198] sm:$0xff]
      %v758 = vld [vmem:[%s5 + $0x1a0] sm:$0xff]
      %v759 = vld [vmem:[%s5 + $0x1a8] sm:$0xff]
      %v760 = vld [vmem:[%s5 + $0x1b0] sm:$0xff]
      %v761 = vld [vmem:[%s5 + $0x1b8] sm:$0xff]
      %v762 = vld [vmem:[%s5 + $0x1c0] sm:$0xff]
      %v763 = vld [vmem:[%s5 + $0x1c8] sm:$0xff]
      %v764 = vld [vmem:[%s5 + $0x1d0] sm:$0xff]
      %v765 = vld [vmem:[%s5 + $0x1d8] sm:$0xff]
      %v766 = vld [vmem:[%s5 + $0x1e0] sm:$0xff]
      %v767 = vld [vmem:[%s5 + $0x1e8] sm:$0xff]
      %v768 = vld [vmem:[%s5 + $0x1f0] sm:$0xff]
      %v769 = vld [vmem:[%s5 + $0x1f8] sm:$0xff]
      %v770 = vld [vmem:[%s5 + $0x200] sm:$0xff]
      %v771 = vld [vmem:[%s5 + $0x208] sm:$0xff]
      %v772 = vld [vmem:[%s5 + $0x210] sm:$0xff]
      %v773 = vld [vmem:[%s5 + $0x218] sm:$0xff]
      %v774 = vld [vmem:[%s5 + $0x220] sm:$0xff]
      %v775 = vld [vmem:[%s5 + $0x228] sm:$0xff]
      %v776 = vld [vmem:[%s5 + $0x230] sm:$0xff]
      %v777 = vld [vmem:[%s5 + $0x238] sm:$0xff]
      %v778 = vld [vmem:[%s5 + $0x240] sm:$0xff]
      %v779 = vld [vmem:[%s5 + $0x248] sm:$0xff]
      %v780 = vld [vmem:[%s5 + $0x250] sm:$0xff]
      %v781 = vld [vmem:[%s5 + $0x258] sm:$0xff]
      %v782 = vld [vmem:[%s5 + $0x260] sm:$0xff]
      %v783 = vld [vmem:[%s5 + $0x268] sm:$0xff]
      %v784 = vld [vmem:[%s5 + $0x270] sm:$0xff]
      %v785 = vld [vmem:[%s5 + $0x278] sm:$0xff]
      %v786 = vld [vmem:[%s5 + $0x280] sm:$0xff]
      %v787 = vld [vmem:[%s5 + $0x288] sm:$0xff]
      %v788 = vld [vmem:[%s5 + $0x290] sm:$0xff]
      %v789 = vld [vmem:[%s5 + $0x298] sm:$0xff]
      %v790 = vld [vmem:[%s5 + $0x2a0] sm:$0xff]
      %v791 = vld [vmem:[%s5 + $0x2a8] sm:$0xff]
      %v792 = vld [vmem:[%s5 + $0x2b0] sm:$0xff]
      %v793 = vld [vmem:[%s5 + $0x2b8] sm:$0xff]
      %v794 = vld [vmem:[%s5 + $0x2c0] sm:$0xff]
      %v795 = vld [vmem:[%s5 + $0x2c8] sm:$0xff]
      %v796 = vld [vmem:[%s5 + $0x2d0] sm:$0xff]
      %v797 = vld [vmem:[%s5 + $0x2d8] sm:$0xff]
      %v798 = vld [vmem:[%s5 + $0x2e0] sm:$0xff]
      %v799 = vld [vmem:[%s5 + $0x2e8] sm:$0xff]
      %v800 = vld [vmem:[%s5 + $0x2f0] sm:$0xff]
      %v801 = vld [vmem:[%s5 + $0x2f8] sm:$0xff]
      %v802 = vld [vmem:[%s5 + $0x300] sm:$0xff]
      %v803 = vld [vmem:[%s5 + $0x308] sm:$0xff]
      %v804 = vld [vmem:[%s5 + $0x310] sm:$0xff]
      %v805 = vld [vmem:[%s5 + $0x318] sm:$0xff]
      %v806 = vld [vmem:[%s5 + $0x320] sm:$0xff]
      %v807 = vld [vmem:[%s5 + $0x328] sm:$0xff]
      %v808 = vld [vmem:[%s5 + $0x330] sm:$0xff]
      %v809 = vld [vmem:[%s5 + $0x338] sm:$0xff]
      %v810 = vld [vmem:[%s5 + $0x340] sm:$0xff]
      %v811 = vld [vmem:[%s5 + $0x348] sm:$0xff]
      %v812 = vld [vmem:[%s5 + $0x350] sm:$0xff]
      %v813 = vld [vmem:[%s5 + $0x358] sm:$0xff]
      %v814 = vld [vmem:[%s5 + $0x360] sm:$0xff]
      %v815 = vld [vmem:[%s5 + $0x368] sm:$0xff]
      %v816 = vld [vmem:[%s5 + $0x370] sm:$0xff]
      %v817 = vld [vmem:[%s5 + $0x378] sm:$0xff]
      %v818 = vld [vmem:[%s5 + $0x380] sm:$0xff]
      %v819 = vld [vmem:[%s5 + $0x388] sm:$0xff]
      %v820 = vld [vmem:[%s5 + $0x390] sm:$0xff]
      %v821 = vld [vmem:[%s5 + $0x398] sm:$0xff]
      %v822 = vld [vmem:[%s5 + $0x3a0] sm:$0xff]
      %v823 = vld [vmem:[%s5 + $0x3a8] sm:$0xff]
      %v824 = vld [vmem:[%s5 + $0x3b0] sm:$0xff]
      %v825 = vld [vmem:[%s5 + $0x3b8] sm:$0xff]
      %v826 = vld [vmem:[%s5 + $0x3c0] sm:$0xff]
      %v827 = vld [vmem:[%s5 + $0x3c8] sm:$0xff]
      %v828 = vld [vmem:[%s5 + $0x3d0] sm:$0xff]
      %v829 = vld [vmem:[%s5 + $0x3d8] sm:$0xff]
      %v830 = vld [vmem:[%s5 + $0x3e0] sm:$0xff]
      %v831 = vld [vmem:[%s5 + $0x3e8] sm:$0xff]
      %v832 = vld [vmem:[%s5 + $0x3f0] sm:$0xff]
      %v833 = vld [vmem:[%s5 + $0x3f8] sm:$0xff]
      %v834 = vld [vmem:[%s5 + $0x400] sm:$0xff]
      %v835 = vld [vmem:[%s5 + $0x408] sm:$0xff]
      %v836 = vld [vmem:[%s5 + $0x410] sm:$0xff]
      %v837 = vld [vmem:[%s5 + $0x418] sm:$0xff]
      %v838 = vld [vmem:[%s5 + $0x420] sm:$0xff]
      %v839 = vld [vmem:[%s5 + $0x428] sm:$0xff]
      %v840 = vld [vmem:[%s5 + $0x430] sm:$0xff]
      %v841 = vld [vmem:[%s5 + $0x438] sm:$0xff]
      %v842 = vld [vmem:[%s5 + $0x440] sm:$0xff]
      %v843 = vld [vmem:[%s5 + $0x448] sm:$0xff]
      %v844 = vld [vmem:[%s5 + $0x450] sm:$0xff]
      %v845 = vld [vmem:[%s5 + $0x458] sm:$0xff]
      %v846 = vld [vmem:[%s5 + $0x460] sm:$0xff]
      %v847 = vld [vmem:[%s5 + $0x468] sm:$0xff]
      %v848 = vld [vmem:[%s5 + $0x470] sm:$0xff]
      %v849 = vld [vmem:[%s5 + $0x478] sm:$0xff]
      %v850 = vld [vmem:[%s5 + $0x480] sm:$0xff]
      %v851 = vld [vmem:[%s5 + $0x488] sm:$0xff]
      %v852 = vld [vmem:[%s5 + $0x490] sm:$0xff]
      %v853 = vld [vmem:[%s5 + $0x498] sm:$0xff]
      %v854 = vld [vmem:[%s5 + $0x4a0] sm:$0xff]
      %v855 = vld [vmem:[%s5 + $0x4a8] sm:$0xff]
      %v856 = vld [vmem:[%s5 + $0x4b0] sm:$0xff]
      %v857 = vld [vmem:[%s5 + $0x4b8] sm:$0xff]
      %v858 = vld [vmem:[%s5 + $0x4c0] sm:$0xff]
      %v859 = vld [vmem:[%s5 + $0x4c8] sm:$0xff]
      %v860 = vld [vmem:[%s5 + $0x4d0] sm:$0xff]
      %v861 = vld [vmem:[%s5 + $0x4d8] sm:$0xff]
      %v862 = vld [vmem:[%s5 + $0x4e0] sm:$0xff]
      %v863 = vld [vmem:[%s5 + $0x4e8] sm:$0xff]
      %v864 = vld [vmem:[%s5 + $0x4f0] sm:$0xff]
      %v865 = vld [vmem:[%s5 + $0x4f8] sm:$0xff]
      %v866 = vld [vmem:[%s5 + $0x500] sm:$0xff]
      %v867 = vld [vmem:[%s5 + $0x508] sm:$0xff]
      %v868 = vld [vmem:[%s5 + $0x510] sm:$0xff]
      %v869 = vld [vmem:[%s5 + $0x518] sm:$0xff]
      %v870 = vld [vmem:[%s5 + $0x520] sm:$0xff]
      %v871 = vld [vmem:[%s5 + $0x528] sm:$0xff]
      %v872 = vld [vmem:[%s5 + $0x530] sm:$0xff]
      %v873 = vld [vmem:[%s5 + $0x538] sm:$0xff]
      %v874 = vld [vmem:[%s5 + $0x540] sm:$0xff]
      %v875 = vld [vmem:[%s5 + $0x548] sm:$0xff]
      %v876 = vld [vmem:[%s5 + $0x550] sm:$0xff]
      %v877 = vld [vmem:[%s5 + $0x558] sm:$0xff]
      %v878 = vld [vmem:[%s5 + $0x560] sm:$0xff]
      %v879 = vld [vmem:[%s5 + $0x568] sm:$0xff]
      %v880 = vld [vmem:[%s5 + $0x570] sm:$0xff]
      %v881 = vld [vmem:[%s5 + $0x578] sm:$0xff]
      %v882 = vld [vmem:[%s5 + $0x580] sm:$0xff]
      %v883 = vld [vmem:[%s5 + $0x588] sm:$0xff]
      %v884 = vld [vmem:[%s5 + $0x590] sm:$0xff]
      %v885 = vld [vmem:[%s5 + $0x598] sm:$0xff]
      %v886 = vld [vmem:[%s5 + $0x5a0] sm:$0xff]
      %v887 = vld [vmem:[%s5 + $0x5a8] sm:$0xff]
      %v888 = vld [vmem:[%s5 + $0x5b0] sm:$0xff]
      %v889 = vld [vmem:[%s5 + $0x5b8] sm:$0xff]
      %v890 = vld [vmem:[%s5 + $0x5c0] sm:$0xff]
      %v891 = vld [vmem:[%s5 + $0x5c8] sm:$0xff]
      %v892 = vld [vmem:[%s5 + $0x5d0] sm:$0xff]
      %v893 = vld [vmem:[%s5 + $0x5d8] sm:$0xff]
      %v894 = vld [vmem:[%s5 + $0x5e0] sm:$0xff]
      %v895 = vld [vmem:[%s5 + $0x5e8] sm:$0xff]
      %v896 = vld [vmem:[%s5 + $0x5f0] sm:$0xff]
      %v897 = vld [vmem:[%s5 + $0x5f8] sm:$0xff]
      %v898 = vld [vmem:[%s6] sm:$0x3]
      %v900 = vperm.slane %v898, 0
      %v901 = vperm.slane %v898, 1
      %904 = vmatpush.msra.mxu0 %v736
      %905 = vmatpush.msra.mxu0 %v734
      %906 = vmatpush.msra.mxu0 %v732
      %907 = vmatpush.msra.mxu0 %v730
      %908 = vmatpush.msra.mxu0 %v728
      %909 = vmatpush.msra.mxu0 %v726
      %910 = vmatpush.msra.mxu0 %v724
      %911 = vmatpush.msra.mxu0 %v722
      %912 = vmatpush.msra.mxu0 %v720
      %913 = vmatpush.msra.mxu0 %v718
      %914 = vmatpush.msra.mxu0 %v716
      %915 = vmatpush.msra.mxu0 %v714
      %916 = vmatpush.msra.mxu0 %v712
      %917 = vmatpush.msra.mxu0 %v710
      %918 = vmatpush.msra.mxu0 %v708
      %919 = vmatpush.msra.mxu0 %v706
      %920 = vmatmul.f32.gmra.mxu0 %v668
      %v921 = vpop.f32.mrf.mxu0
      %v922 = vadd.f32 %v900, %v921
      %923 = vmatmul.f32.gmra.mxu0 %v659
      %v924 = vpop.f32.mrf.mxu0
      %v925 = vadd.f32 %v900, %v924
      %926 = vdwg.mxu0
      %927 = vmatpush.msra.mxu0 %v768
      %928 = vmatpush.msra.mxu0 %v766
      %929 = vmatpush.msra.mxu0 %v764
      %930 = vmatpush.msra.mxu0 %v762
      %931 = vmatpush.msra.mxu0 %v760
      %932 = vmatpush.msra.mxu0 %v758
      %933 = vmatpush.msra.mxu0 %v756
      %934 = vmatpush.msra.mxu0 %v754
      %935 = vmatpush.msra.mxu0 %v752
      %936 = vmatpush.msra.mxu0 %v750
      %937 = vmatpush.msra.mxu0 %v748
      %938 = vmatpush.msra.mxu0 %v746
      %939 = vmatpush.msra.mxu0 %v744
      %940 = vmatpush.msra.mxu0 %v742
      %941 = vmatpush.msra.mxu0 %v740
      %942 = vmatpush.msra.mxu0 %v738
      %943 = vmatmul.f32.gmra.mxu0 %v669
      %v944 = vpop.f32.mrf.mxu0
      %v945 = vadd.f32 %v922, %v944
      %946 = vmatmul.f32.gmra.mxu0 %v661
      %v947 = vpop.f32.mrf.mxu0
      %v948 = vadd.f32 %v925, %v947
      %949 = vdwg.mxu0
      %950 = vmatpush.msra.mxu0 %v800
      %951 = vmatpush.msra.mxu0 %v798
      %952 = vmatpush.msra.mxu0 %v796
      %953 = vmatpush.msra.mxu0 %v794
      %954 = vmatpush.msra.mxu0 %v792
      %955 = vmatpush.msra.mxu0 %v790
      %956 = vmatpush.msra.mxu0 %v788
      %957 = vmatpush.msra.mxu0 %v786
      %958 = vmatpush.msra.mxu0 %v784
      %959 = vmatpush.msra.mxu0 %v782
      %960 = vmatpush.msra.mxu0 %v780
      %961 = vmatpush.msra.mxu0 %v778
      %962 = vmatpush.msra.mxu0 %v776
      %963 = vmatpush.msra.mxu0 %v774
      %964 = vmatpush.msra.mxu0 %v772
      %965 = vmatpush.msra.mxu0 %v770
      %966 = vmatmul.f32.gmra.mxu0 %v679
      %v967 = vpop.f32.mrf.mxu0
      %v968 = vadd.f32 %v945, %v967
      %969 = vmatmul.f32.gmra.mxu0 %v684
      %v970 = vpop.f32.mrf.mxu0
      %v971 = vadd.f32 %v948, %v970
      %972 = vdwg.mxu0
      %973 = vmatpush.msra.mxu0 %v832
      %974 = vmatpush.msra.mxu0 %v830
      %975 = vmatpush.msra.mxu0 %v828
      %976 = vmatpush.msra.mxu0 %v826
      %977 = vmatpush.msra.mxu0 %v824
      %978 = vmatpush.msra.mxu0 %v822
      %979 = vmatpush.msra.mxu0 %v820
      %980 = vmatpush.msra.mxu0 %v818
      %981 = vmatpush.msra.mxu0 %v816
      %982 = vmatpush.msra.mxu0 %v814
      %983 = vmatpush.msra.mxu0 %v812
      %984 = vmatpush.msra.mxu0 %v810
      %985 = vmatpush.msra.mxu0 %v808
      %986 = vmatpush.msra.mxu0 %v806
      %987 = vmatpush.msra.mxu0 %v804
      %988 = vmatpush.msra.mxu0 %v802
      %989 = vmatmul.f32.gmra.mxu0 %v682
      %v990 = vpop.f32.mrf.mxu0
      %v991 = vadd.f32 %v968, %v990
      %992 = vmatmul.f32.gmra.mxu0 %v686
      %v993 = vpop.f32.mrf.mxu0
      %v994 = vadd.f32 %v971, %v993
      %995 = vdwg.mxu0
      %996 = vmatpush.msra.mxu0 %v864
      %997 = vmatpush.msra.mxu0 %v862
      %998 = vmatpush.msra.mxu0 %v860
      %999 = vmatpush.msra.mxu0 %v858
      %1000 = vmatpush.msra.mxu0 %v856
      %1001 = vmatpush.msra.mxu0 %v854
      %1002 = vmatpush.msra.mxu0 %v852
      %1003 = vmatpush.msra.mxu0 %v850
      %1004 = vmatpush.msra.mxu0 %v848
      %1005 = vmatpush.msra.mxu0 %v846
      %1006 = vmatpush.msra.mxu0 %v844
      %1007 = vmatpush.msra.mxu0 %v842
      %1008 = vmatpush.msra.mxu0 %v840
      %1009 = vmatpush.msra.mxu0 %v838
      %1010 = vmatpush.msra.mxu0 %v836
      %1011 = vmatpush.msra.mxu0 %v834
      %1012 = vmatmul.f32.gmra.mxu0 %v694
      %v1013 = vpop.f32.mrf.mxu0
      %v1014 = vadd.f32 %v991, %v1013
      %1015 = vmatmul.f32.gmra.mxu0 %v699
      %v1016 = vpop.f32.mrf.mxu0
      %v1017 = vadd.f32 %v994, %v1016
      %1018 = vdwg.mxu0
      %1019 = vmatpush.msra.mxu0 %v896
      %1020 = vmatpush.msra.mxu0 %v894
      %1021 = vmatpush.msra.mxu0 %v892
      %1022 = vmatpush.msra.mxu0 %v890
      %1023 = vmatpush.msra.mxu0 %v888
      %1024 = vmatpush.msra.mxu0 %v886
      %1025 = vmatpush.msra.mxu0 %v884
      %1026 = vmatpush.msra.mxu0 %v882
      %1027 = vmatpush.msra.mxu0 %v880
      %1028 = vmatpush.msra.mxu0 %v878
      %1029 = vmatpush.msra.mxu0 %v876
      %1030 = vmatpush.msra.mxu0 %v874
      %1031 = vmatpush.msra.mxu0 %v872
      %1032 = vmatpush.msra.mxu0 %v870
      %1033 = vmatpush.msra.mxu0 %v868
      %1034 = vmatpush.msra.mxu0 %v866
      %1035 = vmatmul.f32.gmra.mxu0 %v697
      %v1036 = vpop.f32.mrf.mxu0
      %v1037 = vadd.f32 %v1014, %v1036
      %1038 = vmatmul.f32.gmra.mxu0 %v701
      %v1039 = vpop.f32.mrf.mxu0
      %v1040 = vadd.f32 %v1017, %v1039
      %1041 = vdwg.mxu0
      %1042 = vmatpush.msra.mxu0 %v737
      %1043 = vmatpush.msra.mxu0 %v735
      %1044 = vmatpush.msra.mxu0 %v733
      %1045 = vmatpush.msra.mxu0 %v731
      %1046 = vmatpush.msra.mxu0 %v729
      %1047 = vmatpush.msra.mxu0 %v727
      %1048 = vmatpush.msra.mxu0 %v725
      %1049 = vmatpush.msra.mxu0 %v723
      %1050 = vmatpush.msra.mxu0 %v721
      %1051 = vmatpush.msra.mxu0 %v719
      %1052 = vmatpush.msra.mxu0 %v717
      %1053 = vmatpush.msra.mxu0 %v715
      %1054 = vmatpush.msra.mxu0 %v713
      %1055 = vmatpush.msra.mxu0 %v711
      %1056 = vmatpush.msra.mxu0 %v709
      %1057 = vmatpush.msra.mxu0 %v707
      %1058 = vmatmul.f32.gmra.mxu0 %v668
      %v1059 = vpop.f32.mrf.mxu0
      %v1060 = vadd.f32 %v901, %v1059
      %1061 = vmatmul.f32.gmra.mxu0 %v659
      %v1062 = vpop.f32.mrf.mxu0
      %v1063 = vadd.f32 %v901, %v1062
      %1064 = vdwg.mxu0
      %1065 = vmatpush.msra.mxu0 %v769
      %1066 = vmatpush.msra.mxu0 %v767
      %1067 = vmatpush.msra.mxu0 %v765
      %1068 = vmatpush.msra.mxu0 %v763
      %1069 = vmatpush.msra.mxu0 %v761
      %1070 = vmatpush.msra.mxu0 %v759
      %1071 = vmatpush.msra.mxu0 %v757
      %1072 = vmatpush.msra.mxu0 %v755
      %1073 = vmatpush.msra.mxu0 %v753
      %1074 = vmatpush.msra.mxu0 %v751
      %1075 = vmatpush.msra.mxu0 %v749
      %1076 = vmatpush.msra.mxu0 %v747
      %1077 = vmatpush.msra.mxu0 %v745
      %1078 = vmatpush.msra.mxu0 %v743
      %1079 = vmatpush.msra.mxu0 %v741
      %1080 = vmatpush.msra.mxu0 %v739
      %1081 = vmatmul.f32.gmra.mxu0 %v669
      %v1082 = vpop.f32.mrf.mxu0
      %v1083 = vadd.f32 %v1060, %v1082
      %1084 = vmatmul.f32.gmra.mxu0 %v661
      %v1085 = vpop.f32.mrf.mxu0
      %v1086 = vadd.f32 %v1063, %v1085
      %1087 = vdwg.mxu0
      %1088 = vmatpush.msra.mxu0 %v801
      %1089 = vmatpush.msra.mxu0 %v799
      %1090 = vmatpush.msra.mxu0 %v797
      %1091 = vmatpush.msra.mxu0 %v795
      %1092 = vmatpush.msra.mxu0 %v793
      %1093 = vmatpush.msra.mxu0 %v791
      %1094 = vmatpush.msra.mxu0 %v789
      %1095 = vmatpush.msra.mxu0 %v787
      %1096 = vmatpush.msra.mxu0 %v785
      %1097 = vmatpush.msra.mxu0 %v783
      %1098 = vmatpush.msra.mxu0 %v781
      %1099 = vmatpush.msra.mxu0 %v779
      %1100 = vmatpush.msra.mxu0 %v777
      %1101 = vmatpush.msra.mxu0 %v775
      %1102 = vmatpush.msra.mxu0 %v773
      %1103 = vmatpush.msra.mxu0 %v771
      %1104 = vmatmul.f32.gmra.mxu0 %v679
      %v1105 = vpop.f32.mrf.mxu0
      %v1106 = vadd.f32 %v1083, %v1105
      %1107 = vmatmul.f32.gmra.mxu0 %v684
      %v1108 = vpop.f32.mrf.mxu0
      %v1109 = vadd.f32 %v1086, %v1108
      %1110 = vdwg.mxu0
      %1111 = vmatpush.msra.mxu0 %v833
      %1112 = vmatpush.msra.mxu0 %v831
      %1113 = vmatpush.msra.mxu0 %v829
      %1114 = vmatpush.msra.mxu0 %v827
      %1115 = vmatpush.msra.mxu0 %v825
      %1116 = vmatpush.msra.mxu0 %v823
      %1117 = vmatpush.msra.mxu0 %v821
      %1118 = vmatpush.msra.mxu0 %v819
      %1119 = vmatpush.msra.mxu0 %v817
      %1120 = vmatpush.msra.mxu0 %v815
      %1121 = vmatpush.msra.mxu0 %v813
      %1122 = vmatpush.msra.mxu0 %v811
      %1123 = vmatpush.msra.mxu0 %v809
      %1124 = vmatpush.msra.mxu0 %v807
      %1125 = vmatpush.msra.mxu0 %v805
      %1126 = vmatpush.msra.mxu0 %v803
      %1127 = vmatmul.f32.gmra.mxu0 %v682
      %v1128 = vpop.f32.mrf.mxu0
      %v1129 = vadd.f32 %v1106, %v1128
      %1130 = vmatmul.f32.gmra.mxu0 %v686
      %v1131 = vpop.f32.mrf.mxu0
      %v1132 = vadd.f32 %v1109, %v1131
      %1133 = vdwg.mxu0
      %1134 = vmatpush.msra.mxu0 %v865
      %1135 = vmatpush.msra.mxu0 %v863
      %1136 = vmatpush.msra.mxu0 %v861
      %1137 = vmatpush.msra.mxu0 %v859
      %1138 = vmatpush.msra.mxu0 %v857
      %1139 = vmatpush.msra.mxu0 %v855
      %1140 = vmatpush.msra.mxu0 %v853
      %1141 = vmatpush.msra.mxu0 %v851
      %1142 = vmatpush.msra.mxu0 %v849
      %1143 = vmatpush.msra.mxu0 %v847
      %1144 = vmatpush.msra.mxu0 %v845
      %1145 = vmatpush.msra.mxu0 %v843
      %1146 = vmatpush.msra.mxu0 %v841
      %1147 = vmatpush.msra.mxu0 %v839
      %1148 = vmatpush.msra.mxu0 %v837
      %1149 = vmatpush.msra.mxu0 %v835
      %1150 = vmatmul.f32.gmra.mxu0 %v694
      %v1151 = vpop.f32.mrf.mxu0
      %v1152 = vadd.f32 %v1129, %v1151
      %1153 = vmatmul.f32.gmra.mxu0 %v699
      %v1154 = vpop.f32.mrf.mxu0
      %v1155 = vadd.f32 %v1132, %v1154
      %1156 = vdwg.mxu0
      %1157 = vmatpush.msra.mxu0 %v897
      %1158 = vmatpush.msra.mxu0 %v895
      %1159 = vmatpush.msra.mxu0 %v893
      %1160 = vmatpush.msra.mxu0 %v891
      %1161 = vmatpush.msra.mxu0 %v889
      %1162 = vmatpush.msra.mxu0 %v887
      %1163 = vmatpush.msra.mxu0 %v885
      %1164 = vmatpush.msra.mxu0 %v883
      %1165 = vmatpush.msra.mxu0 %v881
      %1166 = vmatpush.msra.mxu0 %v879
      %1167 = vmatpush.msra.mxu0 %v877
      %1168 = vmatpush.msra.mxu0 %v875
      %1169 = vmatpush.msra.mxu0 %v873
      %1170 = vmatpush.msra.mxu0 %v871
      %1171 = vmatpush.msra.mxu0 %v869
      %1172 = vmatpush.msra.mxu0 %v867
      %1173 = vmatmul.f32.gmra.mxu0 %v697
      %v1174 = vpop.f32.mrf.mxu0
      %v1175 = vadd.f32 %v1152, %v1174
      %1176 = vmatmul.f32.gmra.mxu0 %v701
      %v1177 = vpop.f32.mrf.mxu0
      %v1178 = vadd.f32 %v1155, %v1177
      %1179 = vdwg.mxu0
      %v1180 = vmax.f32 %v1037, 0.0
      %v1181 = vmax.f32 %v1175, 0.0
      %v1182 = vmax.f32 %v1040, 0.0
      %v1183 = vmax.f32 %v1178, 0.0
      %v1184 = vrot.slane %v473, 1
      %v1185 = vrot.slane %v473, 2
      %v1186 = vrot.slane %v473, 3
      %v1187 = vrot.slane %v473, 4
      %v1188 = vrot.slane %v473, 5
      %v1189 = vrot.slane %v473, 6
      %v1190 = vperm.slane %v473, 0
      %v1191 = vperm.slane %v1184, 0
      %v1192 = vperm.slane %v1185, 0
      %v1193 = vperm.slane %v1186, 0
      %v1194 = vperm.slane %v1187, 0
      %v1195 = vperm.slane %v1188, 0
      %v1196 = vperm.slane %v1189, 0
      %v1197 = vperm.slane %v480, 0
      %1198 = vst [vmem:[#allocation1] ss:$4 sm:$0xff] %v1190
      %s1199 = scalar_lea.vmem [#allocation1], 1
      %1200 = vst [vmem:[%s1199] ss:$4 sm:$0xff] %v1191
      %s1201 = scalar_lea.vmem [#allocation1], 2
      %1202 = vst [vmem:[%s1201] ss:$4 sm:$0xff] %v1192
      %s1203 = scalar_lea.vmem [#allocation1], 3
      %1204 = vst [vmem:[%s1203] ss:$4 sm:$0xff] %v1193
      %s1205 = scalar_lea.vmem [#allocation1], 32
      %1206 = vst [vmem:[%s1205] ss:$4 sm:$0xff] %v1194
      %s1207 = scalar_lea.vmem [#allocation1], 33
      %1208 = vst [vmem:[%s1207] ss:$4 sm:$0xff] %v1195
      %s1209 = scalar_lea.vmem [#allocation1], 34
      %1210 = vst [vmem:[%s1209] ss:$4 sm:$0xff] %v1196
      %s1211 = scalar_lea.vmem [#allocation1], 35
      %1212 = vst [vmem:[%s1211] ss:$4 sm:$0xff] %v1197
      %v1213 = vld.sshfl [vmem:[#allocation1] sm:$0xff pattern:$0x73625140]
      %v1214 = vld.sshfl [vmem:[#allocation1 + $0x20] sm:$0xff pattern:$0x73625140]
      %v1215 = vld [vmem:[%s7] sm:$0xff]
      %v1216 = vld [vmem:[%s7 + $0x8] sm:$0xff]
      %v1217 = vld [vmem:[%s7 + $0x10] sm:$0xff]
      %v1218 = vld [vmem:[%s7 + $0x18] sm:$0xff]
      %v1219 = vld [vmem:[%s7 + $0x20] sm:$0xff]
      %v1220 = vld [vmem:[%s7 + $0x28] sm:$0xff]
      %v1221 = vld [vmem:[%s7 + $0x30] sm:$0xff]
      %v1222 = vld [vmem:[%s7 + $0x38] sm:$0xff]
      %v1223 = vld [vmem:[%s7 + $0x40] sm:$0xff]
      %v1224 = vld [vmem:[%s7 + $0x48] sm:$0xff]
      %v1225 = vld [vmem:[%s7 + $0x50] sm:$0xff]
      %v1226 = vld [vmem:[%s7 + $0x58] sm:$0xff]
      %v1227 = vld [vmem:[%s7 + $0x60] sm:$0xff]
      %v1228 = vld [vmem:[%s7 + $0x68] sm:$0xff]
      %v1229 = vld [vmem:[%s7 + $0x70] sm:$0xff]
      %v1230 = vld [vmem:[%s7 + $0x78] sm:$0xff]
      %v1231 = vld [vmem:[%s7 + $0x80] sm:$0xff]
      %v1232 = vld [vmem:[%s7 + $0x88] sm:$0xff]
      %v1233 = vld [vmem:[%s7 + $0x90] sm:$0xff]
      %v1234 = vld [vmem:[%s7 + $0x98] sm:$0xff]
      %v1235 = vld [vmem:[%s7 + $0xa0] sm:$0xff]
      %v1236 = vld [vmem:[%s7 + $0xa8] sm:$0xff]
      %v1237 = vld [vmem:[%s7 + $0xb0] sm:$0xff]
      %v1238 = vld [vmem:[%s7 + $0xb8] sm:$0xff]
      %v1239 = vld [vmem:[%s7 + $0xc0] sm:$0xff]
      %v1240 = vld [vmem:[%s7 + $0xc8] sm:$0xff]
      %v1241 = vld [vmem:[%s7 + $0xd0] sm:$0xff]
      %v1242 = vld [vmem:[%s7 + $0xd8] sm:$0xff]
      %v1243 = vld [vmem:[%s7 + $0xe0] sm:$0xff]
      %v1244 = vld [vmem:[%s7 + $0xe8] sm:$0xff]
      %v1245 = vld [vmem:[%s7 + $0xf0] sm:$0xff]
      %v1246 = vld [vmem:[%s7 + $0xf8] sm:$0xff]
      %v1247 = vld [vmem:[%s7 + $0x100] sm:$0xff]
      %v1248 = vld [vmem:[%s7 + $0x108] sm:$0xff]
      %v1249 = vld [vmem:[%s7 + $0x110] sm:$0xff]
      %v1250 = vld [vmem:[%s7 + $0x118] sm:$0xff]
      %v1251 = vld [vmem:[%s7 + $0x120] sm:$0xff]
      %v1252 = vld [vmem:[%s7 + $0x128] sm:$0xff]
      %v1253 = vld [vmem:[%s7 + $0x130] sm:$0xff]
      %v1254 = vld [vmem:[%s7 + $0x138] sm:$0xff]
      %v1255 = vld [vmem:[%s7 + $0x140] sm:$0xff]
      %v1256 = vld [vmem:[%s7 + $0x148] sm:$0xff]
      %v1257 = vld [vmem:[%s7 + $0x150] sm:$0xff]
      %v1258 = vld [vmem:[%s7 + $0x158] sm:$0xff]
      %v1259 = vld [vmem:[%s7 + $0x160] sm:$0xff]
      %v1260 = vld [vmem:[%s7 + $0x168] sm:$0xff]
      %v1261 = vld [vmem:[%s7 + $0x170] sm:$0xff]
      %v1262 = vld [vmem:[%s7 + $0x178] sm:$0xff]
      %v1263 = vld [vmem:[%s7 + $0x180] sm:$0xff]
      %v1264 = vld [vmem:[%s7 + $0x188] sm:$0xff]
      %v1265 = vld [vmem:[%s7 + $0x190] sm:$0xff]
      %v1266 = vld [vmem:[%s7 + $0x198] sm:$0xff]
      %v1267 = vld [vmem:[%s7 + $0x1a0] sm:$0xff]
      %v1268 = vld [vmem:[%s7 + $0x1a8] sm:$0xff]
      %v1269 = vld [vmem:[%s7 + $0x1b0] sm:$0xff]
      %v1270 = vld [vmem:[%s7 + $0x1b8] sm:$0xff]
      %v1271 = vld [vmem:[%s7 + $0x1c0] sm:$0xff]
      %v1272 = vld [vmem:[%s7 + $0x1c8] sm:$0xff]
      %v1273 = vld [vmem:[%s7 + $0x1d0] sm:$0xff]
      %v1274 = vld [vmem:[%s7 + $0x1d8] sm:$0xff]
      %v1275 = vld [vmem:[%s7 + $0x1e0] sm:$0xff]
      %v1276 = vld [vmem:[%s7 + $0x1e8] sm:$0xff]
      %v1277 = vld [vmem:[%s7 + $0x1f0] sm:$0xff]
      %v1278 = vld [vmem:[%s7 + $0x1f8] sm:$0xff]
      %v1279 = vld [vmem:[%s7 + $0x200] sm:$0xff]
      %v1280 = vld [vmem:[%s7 + $0x208] sm:$0xff]
      %v1281 = vld [vmem:[%s7 + $0x210] sm:$0xff]
      %v1282 = vld [vmem:[%s7 + $0x218] sm:$0xff]
      %v1283 = vld [vmem:[%s7 + $0x220] sm:$0xff]
      %v1284 = vld [vmem:[%s7 + $0x228] sm:$0xff]
      %v1285 = vld [vmem:[%s7 + $0x230] sm:$0xff]
      %v1286 = vld [vmem:[%s7 + $0x238] sm:$0xff]
      %v1287 = vld [vmem:[%s7 + $0x240] sm:$0xff]
      %v1288 = vld [vmem:[%s7 + $0x248] sm:$0xff]
      %v1289 = vld [vmem:[%s7 + $0x250] sm:$0xff]
      %v1290 = vld [vmem:[%s7 + $0x258] sm:$0xff]
      %v1291 = vld [vmem:[%s7 + $0x260] sm:$0xff]
      %v1292 = vld [vmem:[%s7 + $0x268] sm:$0xff]
      %v1293 = vld [vmem:[%s7 + $0x270] sm:$0xff]
      %v1294 = vld [vmem:[%s7 + $0x278] sm:$0xff]
      %v1295 = vld [vmem:[%s8] sm:$0x3]
      %v1297 = vperm.slane %v1295, 0
      %v1298 = vperm.slane %v1295, 1
      %v1301 = vsel %vm512, %v1213, 0
      %v1303 = vsel %vm512, %v1214, 0
      %1305 = vmatpush.msra.mxu0 %v1245
      %1306 = vmatpush.msra.mxu0 %v1243
      %1307 = vmatpush.msra.mxu0 %v1241
      %1308 = vmatpush.msra.mxu0 %v1239
      %1309 = vmatpush.msra.mxu0 %v1237
      %1310 = vmatpush.msra.mxu0 %v1235
      %1311 = vmatpush.msra.mxu0 %v1233
      %1312 = vmatpush.msra.mxu0 %v1231
      %1313 = vmatpush.msra.mxu0 %v1229
      %1314 = vmatpush.msra.mxu0 %v1227
      %1315 = vmatpush.msra.mxu0 %v1225
      %1316 = vmatpush.msra.mxu0 %v1223
      %1317 = vmatpush.msra.mxu0 %v1221
      %1318 = vmatpush.msra.mxu0 %v1219
      %1319 = vmatpush.msra.mxu0 %v1217
      %1320 = vmatpush.msra.mxu0 %v1215
      %1321 = vmatmul.f32.gmra.mxu0 %v1180
      %v1322 = vpop.f32.mrf.mxu0
      %v1323 = vadd.f32 %v1297, %v1322
      %1324 = vmatmul.f32.gmra.mxu0 %v1182
      %v1325 = vpop.f32.mrf.mxu0
      %v1326 = vadd.f32 %v1297, %v1325
      %1327 = vdwg.mxu0
      %1328 = vmatpush.msra.mxu0 %v1277
      %1329 = vmatpush.msra.mxu0 %v1275
      %1330 = vmatpush.msra.mxu0 %v1273
      %1331 = vmatpush.msra.mxu0 %v1271
      %1332 = vmatpush.msra.mxu0 %v1269
      %1333 = vmatpush.msra.mxu0 %v1267
      %1334 = vmatpush.msra.mxu0 %v1265
      %1335 = vmatpush.msra.mxu0 %v1263
      %1336 = vmatpush.msra.mxu0 %v1261
      %1337 = vmatpush.msra.mxu0 %v1259
      %1338 = vmatpush.msra.mxu0 %v1257
      %1339 = vmatpush.msra.mxu0 %v1255
      %1340 = vmatpush.msra.mxu0 %v1253
      %1341 = vmatpush.msra.mxu0 %v1251
      %1342 = vmatpush.msra.mxu0 %v1249
      %1343 = vmatpush.msra.mxu0 %v1247
      %1344 = vmatmul.f32.gmra.mxu0 %v1181
      %v1345 = vpop.f32.mrf.mxu0
      %v1346 = vadd.f32 %v1323, %v1345
      %1347 = vmatmul.f32.gmra.mxu0 %v1183
      %v1348 = vpop.f32.mrf.mxu0
      %v1349 = vadd.f32 %v1326, %v1348
      %1350 = vdwg.mxu0
      %1351 = vmatpush.msra.mxu0 0.0
      %1352 = vmatpush.msra.mxu0 0.0
      %1353 = vmatpush.msra.mxu0 0.0
      %1354 = vmatpush.msra.mxu0 0.0
      %1355 = vmatpush.msra.mxu0 0.0
      %1356 = vmatpush.msra.mxu0 0.0
      %1357 = vmatpush.msra.mxu0 0.0
      %1358 = vmatpush.msra.mxu0 0.0
      %1359 = vmatpush.msra.mxu0 %v1293
      %1360 = vmatpush.msra.mxu0 %v1291
      %1361 = vmatpush.msra.mxu0 %v1289
      %1362 = vmatpush.msra.mxu0 %v1287
      %1363 = vmatpush.msra.mxu0 %v1285
      %1364 = vmatpush.msra.mxu0 %v1283
      %1365 = vmatpush.msra.mxu0 %v1281
      %1366 = vmatpush.msra.mxu0 %v1279
      %1367 = vmatmul.f32.gmra.mxu0 %v1301
      %v1368 = vpop.f32.mrf.mxu0
      %v1369 = vadd.f32 %v1346, %v1368
      %1370 = vmatmul.f32.gmra.mxu0 %v1303
      %v1371 = vpop.f32.mrf.mxu0
      %v1372 = vadd.f32 %v1349, %v1371
      %1373 = vdwg.mxu0
      %1374 = vmatpush.msra.mxu0 %v1246
      %1375 = vmatpush.msra.mxu0 %v1244
      %1376 = vmatpush.msra.mxu0 %v1242
      %1377 = vmatpush.msra.mxu0 %v1240
      %1378 = vmatpush.msra.mxu0 %v1238
      %1379 = vmatpush.msra.mxu0 %v1236
      %1380 = vmatpush.msra.mxu0 %v1234
      %1381 = vmatpush.msra.mxu0 %v1232
      %1382 = vmatpush.msra.mxu0 %v1230
      %1383 = vmatpush.msra.mxu0 %v1228
      %1384 = vmatpush.msra.mxu0 %v1226
      %1385 = vmatpush.msra.mxu0 %v1224
      %1386 = vmatpush.msra.mxu0 %v1222
      %1387 = vmatpush.msra.mxu0 %v1220
      %1388 = vmatpush.msra.mxu0 %v1218
      %1389 = vmatpush.msra.mxu0 %v1216
      %1390 = vmatmul.f32.gmra.mxu0 %v1180
      %v1391 = vpop.f32.mrf.mxu0
      %v1392 = vadd.f32 %v1298, %v1391
      %1393 = vmatmul.f32.gmra.mxu0 %v1182
      %v1394 = vpop.f32.mrf.mxu0
      %v1395 = vadd.f32 %v1298, %v1394
      %1396 = vdwg.mxu0
      %1397 = vmatpush.msra.mxu0 %v1278
      %1398 = vmatpush.msra.mxu0 %v1276
      %1399 = vmatpush.msra.mxu0 %v1274
      %1400 = vmatpush.msra.mxu0 %v1272
      %1401 = vmatpush.msra.mxu0 %v1270
      %1402 = vmatpush.msra.mxu0 %v1268
      %1403 = vmatpush.msra.mxu0 %v1266
      %1404 = vmatpush.msra.mxu0 %v1264
      %1405 = vmatpush.msra.mxu0 %v1262
      %1406 = vmatpush.msra.mxu0 %v1260
      %1407 = vmatpush.msra.mxu0 %v1258
      %1408 = vmatpush.msra.mxu0 %v1256
      %1409 = vmatpush.msra.mxu0 %v1254
      %1410 = vmatpush.msra.mxu0 %v1252
      %1411 = vmatpush.msra.mxu0 %v1250
      %1412 = vmatpush.msra.mxu0 %v1248
      %1413 = vmatmul.f32.gmra.mxu0 %v1181
      %v1414 = vpop.f32.mrf.mxu0
      %v1415 = vadd.f32 %v1392, %v1414
      %1416 = vmatmul.f32.gmra.mxu0 %v1183
      %v1417 = vpop.f32.mrf.mxu0
      %v1418 = vadd.f32 %v1395, %v1417
      %1419 = vdwg.mxu0
      %1420 = vmatpush.msra.mxu0 0.0
      %1421 = vmatpush.msra.mxu0 0.0
      %1422 = vmatpush.msra.mxu0 0.0
      %1423 = vmatpush.msra.mxu0 0.0
      %1424 = vmatpush.msra.mxu0 0.0
      %1425 = vmatpush.msra.mxu0 0.0
      %1426 = vmatpush.msra.mxu0 0.0
      %1427 = vmatpush.msra.mxu0 0.0
      %1428 = vmatpush.msra.mxu0 %v1294
      %1429 = vmatpush.msra.mxu0 %v1292
      %1430 = vmatpush.msra.mxu0 %v1290
      %1431 = vmatpush.msra.mxu0 %v1288
      %1432 = vmatpush.msra.mxu0 %v1286
      %1433 = vmatpush.msra.mxu0 %v1284
      %1434 = vmatpush.msra.mxu0 %v1282
      %1435 = vmatpush.msra.mxu0 %v1280
      %1436 = vmatmul.f32.gmra.mxu0 %v1301
      %v1437 = vpop.f32.mrf.mxu0
      %v1438 = vadd.f32 %v1415, %v1437
      %1439 = vmatmul.f32.gmra.mxu0 %v1303
      %v1440 = vpop.f32.mrf.mxu0
      %v1441 = vadd.f32 %v1418, %v1440
      %1442 = vdwg.mxu0
      %1443 = vst [vmem:[%s471] sm:$0xff] %v1369
      %1444 = vst [vmem:[%s471 + $0x8] sm:$0xff] %v1438
      %1445 = vst [vmem:[%s471 + $0x10] sm:$0xff] %v1372
      %1446 = vst [vmem:[%s471 + $0x18] sm:$0xff] %v1441
      %s1447 = smul.u32 2, %s25
      %p1448 = scmp.lt.s32.totalorder %s24, 1
      %s1449 = scalar_select %p1448, %s24, 1
      %p1450 = scmp.lt.s32.totalorder %s1447, 3
      %s1451 = scalar_select %p1450, %s1447, 3
      %s1452 = smul.addr %s1451, 2
      %s1453 = smul.addr %s1449, 8
      %s1454 = sadd.s32 %s1452, %s1453
      %s1455 = smul.addr %s1454, 8
      %s1456 = scalar_lea.vmem %s9, %s1455
      // Predicated region
      $region57: #{_lambda_.1} parent=55 // pred_check
        %p1457 = pneg %p274
      $region58: #{_lambda_.1} parent=55 // pred_check_branch
        %1459 = sbr.rel (%p1457) target = $region60
      $region59: #{_lambda_.1} parent=55 // pred_region
        %s1460 = smul.u32 2, %s25
      $region60: #{_lambda_.1} parent=55 // pred_fallthru
        _
    $region56: #{_lambda_.1} parent=5 // pred_fallthru
      _
    %p1461 = scmp.le.s32.totalorder 2, %s15
    // Predicated region
    $region61: #{_lambda_.1} parent=5 // pred_check
      %p1462 = pneg %p1461
    $region62: #{_lambda_.1} parent=5 // pred_check_branch
      %1464 = sbr.rel (%p1462) target = $region64
    $region63: #{_lambda_.1} parent=5 // pred_region
      %s1465 = ssub.s32 %s15, 2
      // Predicated region
      $region65: #{_lambda_.1} parent=63 // pred_check
        %p1466 = pneg %p280
      $region66: #{_lambda_.1} parent=63 // pred_check_branch
        %1468 = sbr.rel (%p1466) target = $region68
      $region67: #{_lambda_.1} parent=63 // pred_region
        %s1469 = smul.u32 2, %s27
        %p1470 = scmp.lt.s32.totalorder %s26, 1
        %s1471 = scalar_select %p1470, %s26, 1
        %p1472 = scmp.lt.s32.totalorder %s1469, 3
        %s1473 = scalar_select %p1472, %s1469, 3
        %s1474 = smul.addr %s1473, 2
        %s1475 = smul.addr %s1471, 8
        %s1476 = sadd.s32 %s1474, %s1475
        %s1477 = smul.addr %s1476, 8
        %s1478 = scalar_lea.vmem %s9, %s1477
      $region68: #{_lambda_.1} parent=63 // pred_fallthru
        _
    $region64: #{_lambda_.1} parent=5 // pred_fallthru
      _
  $region6: #{_lambda_.1} parent=0 // loop_footer
    %s19 = sadd.s32 1, %s15
  $region7: #{_lambda_.1} parent=0 // loop_footer_branch
    %14 = sbr.rel target = $region3
  $region8: #{_lambda_.1} parent=0 // loop_exit
    _

</llo_original>
